<compile_context>
chip_gen: v6e
topology: v6e:2x2x1
jax: 0.10.0
libtpu: 0.0.40
codegen_flags: <defaults>
</compile_context>

<pallas_src>
import functools

import jax
import jax.numpy as jnp
from jax.experimental import pallas as pl
from jax.experimental.pallas import tpu as pltpu

LD = 144     # input feature dim
HID = 512    # hidden dim
OUT = 784    # output dim (written directly, no lane padding)
EPS = 1e-5   # nn.LayerNorm default eps


def _layernorm_f32(x, gamma, beta):
    # Fused single-pass statistics: var = E[x^2] - mu^2 (halves XLU reduce passes).
    mu = jnp.mean(x, axis=-1, keepdims=True)
    ms = jnp.mean(x * x, axis=-1, keepdims=True)
    var = ms - mu * mu
    xn = (x - mu) * jax.lax.rsqrt(var + EPS)          # rsqrt -> EUP slot
    return xn * gamma + beta


def attacker_kernel(z_ref, g1_ref, b1_ref, w1_ref,
                    g2_ref, b2_ref, w2_ref, bias2_ref, o_ref,
                    *, bf16_eltwise):
    # --- lin_pred_model: LayerNorm(144) -> Linear(144,512, no bias) -> Sigmoid ---
    z = z_ref[...].astype(jnp.float32)                               # (TB, 144)
    zn = _layernorm_f32(z, g1_ref[...], b1_ref[...])                 # f32
    h = jnp.dot(zn.astype(jnp.bfloat16), w1_ref[...],                # bf16 MXU,
                preferred_element_type=jnp.float32)                  # f32 acc (TB, 512)
    if bf16_eltwise:
        # v6e/v7x: bf16 EUP/VPU path (2x vreg packing for the sigmoid chain).
        h = jax.nn.sigmoid(h.astype(jnp.bfloat16)).astype(jnp.float32)
    else:
        # v5e/older: no bf16 VPU/EUP -> keep f32 to avoid pure cast overhead.
        h = jax.nn.sigmoid(h)

    # --- syn_model: LayerNorm(512) -> gLinear(512, 784) (assumed affine) ---
    hn = _layernorm_f32(h, g2_ref[...], b2_ref[...])                 # f32 stats
    out = jnp.dot(hn.astype(jnp.bfloat16), w2_ref[...],              # (TB, 784)
                  preferred_element_type=jnp.float32)
    o_ref[...] = (out + bias2_ref[...]).astype(o_ref.dtype)


def _chip_config():
    """Returns (bf16_eltwise_ok, batch_tile_cap) from the local device kind."""
    kind = ""
    try:
        kind = jax.devices()[0].device_kind.lower()
    except Exception:
        pass
    old_gen = any(tag in kind for tag in ("v2", "v3", "v4", "v5"))
    # v5e & older: no bf16 VPU/EUP, 16 MiB scoped-VMEM default -> 512-row tiles.
    # v6e/v7x: bf16 elementwise + 1024-row tiles (fits 32 MiB scoped budget).
    return (not old_gen), (512 if old_gen else 1024)


def _pick_tb(batch, cap):
    if batch < 16:
        return max(8, pl.cdiv(batch, 8) * 8)
    # >= 2 grid steps so the "parallel" batch axis uses both v7x TensorCores.
    half = pl.cdiv(pl.cdiv(batch, 2), 8) * 8
    return max(8, min(cap, half))


def attacker_forward(z, params, *, tb=None):
    B = z.shape[0]
    bf16_eltwise, tb_cap = _chip_config()
    if tb is None:
        tb = _pick_tb(B, tb_cap)
    grid = (pl.cdiv(B, tb),)

    row = lambda i: (i, 0)     # batch-tiled operands
    const = lambda i: (0, 0)   # VMEM-resident weights / LN params

    flops = 2 * B * (LD * HID + HID * OUT)
    bytes_accessed = (B * (LD + OUT) * 4                 # activations in/out (f32)
                      + (LD * HID + HID * OUT) * 2       # bf16 weights
                      + (2 * LD + 2 * HID + OUT) * 4)    # LN params + bias

    kernel = functools.partial(attacker_kernel, bf16_eltwise=bf16_eltwise)

    return pl.pallas_call(
        kernel,
        out_shape=jax.ShapeDtypeStruct((B, OUT), jnp.float32),
        grid=grid,
        in_specs=[
            pl.BlockSpec((tb, LD), row),          # z
            pl.BlockSpec((1, LD), const),         # ln1 gamma
            pl.BlockSpec((1, LD), const),         # ln1 beta
            pl.BlockSpec((LD, HID), const),       # w1 (bf16)
            pl.BlockSpec((1, HID), const),        # ln2 gamma
            pl.BlockSpec((1, HID), const),        # ln2 beta
            pl.BlockSpec((HID, OUT), const),      # w2 (bf16)
            pl.BlockSpec((1, OUT), const),        # b2
        ],
        out_specs=pl.BlockSpec((tb, OUT), row),   # last dim == full array dim
        compiler_params=pltpu.CompilerParams(
            dimension_semantics=("parallel",),
            vmem_limit_bytes=32 * 1024 * 1024),
        cost_estimate=pl.CostEstimate(
            flops=flops,
            transcendentals=B * HID,              # sigmoid exps
            bytes_accessed=bytes_accessed),
    )(
        z,
        params["ln1_gamma"], params["ln1_beta"], params["w1"],
        params["ln2_gamma"], params["ln2_beta"], params["w2"], params["b2"],
    )


def init_params(key):
    k1, k2, k3 = jax.random.split(key, 3)
    bound1 = 1.0 / (LD ** 0.5)
    bound2 = 1.0 / (HID ** 0.5)

    w1 = jax.random.uniform(k1, (LD, HID), jnp.float32, -bound1, bound1)
    w2 = jax.random.uniform(k2, (HID, OUT), jnp.float32, -bound2, bound2)
    b2 = jax.random.uniform(k3, (1, OUT), jnp.float32, -bound2, bound2)

    return {
        "ln1_gamma": jnp.ones((1, LD), jnp.float32),
        "ln1_beta": jnp.zeros((1, LD), jnp.float32),
        "w1": w1.astype(jnp.bfloat16),
        "ln2_gamma": jnp.ones((1, HID), jnp.float32),
        "ln2_beta": jnp.zeros((1, HID), jnp.float32),
        "w2": w2.astype(jnp.bfloat16),
        "b2": b2,
        # keep f32 copies around for the pure-JAX reference
        "_w1_f32": w1, "_w2_f32": w2, "_b2_f32": b2,
    }


def reference_forward(z, params):
    # Pure-JAX f32 reference (same weight values, full-precision math).
    zn = _layernorm_f32(z.astype(jnp.float32),
                        params["ln1_gamma"], params["ln1_beta"])
    h = jax.nn.sigmoid(zn @ params["_w1_f32"])
    hn = _layernorm_f32(h, params["ln2_gamma"], params["ln2_beta"])
    return hn @ params["_w2_f32"] + params["_b2_f32"]


if __name__ == "__main__":
    key = jax.random.PRNGKey(0)
    kp, kz = jax.random.split(key)
    params = init_params(kp)

    B = 8
    z = jax.random.normal(kz, (B, LD), jnp.float32)

    out = attacker_forward(z, params)
    out = jax.block_until_ready(out)

    ref = reference_forward(z, params)
    assert out.shape == (B, OUT)
    # bf16 matmuls (+ bf16 sigmoid on v6e/v7x) vs f32 reference -> relaxed tol.
    assert jnp.allclose(out, ref, atol=5e-2, rtol=5e-2)

    print("KERNEL_OK")
</pallas_src>

<mosaic_0001>
module attributes {stable_mosaic.version = 11 : i64} {
  func.func @attacker_kernel(%arg0: i32, %arg1: memref<8x144xf32, #tpu.memory_space<vmem>>, %arg2: memref<1x144xf32, #tpu.memory_space<vmem>>, %arg3: memref<1x144xf32, #tpu.memory_space<vmem>>, %arg4: memref<144x512xbf16, #tpu.memory_space<vmem>>, %arg5: memref<1x512xf32, #tpu.memory_space<vmem>>, %arg6: memref<1x512xf32, #tpu.memory_space<vmem>>, %arg7: memref<512x784xbf16, #tpu.memory_space<vmem>>, %arg8: memref<1x784xf32, #tpu.memory_space<vmem>>, %arg9: memref<8x784xf32, #tpu.memory_space<vmem>>) attributes {dimension_semantics = [#tpu.dimension_semantics<parallel>], iteration_bounds = array<i64: 1>, scalar_prefetch = 0 : i64, scratch_operands = 0 : i64, tpu.core_type = #tpu.core_type<tc>, window_params = [{transform_indices = @transform_0, window_bounds = array<i64: 8, 144>}, {pipeline_mode = #tpu.pipeline_mode<synchronous>, transform_indices = @transform_1, window_bounds = array<i64: 1, 144>}, {pipeline_mode = #tpu.pipeline_mode<synchronous>, transform_indices = @transform_2, window_bounds = array<i64: 1, 144>}, {pipeline_mode = #tpu.pipeline_mode<synchronous>, transform_indices = @transform_3, window_bounds = array<i64: 144, 512>}, {pipeline_mode = #tpu.pipeline_mode<synchronous>, transform_indices = @transform_4, window_bounds = array<i64: 1, 512>}, {pipeline_mode = #tpu.pipeline_mode<synchronous>, transform_indices = @transform_5, window_bounds = array<i64: 1, 512>}, {pipeline_mode = #tpu.pipeline_mode<synchronous>, transform_indices = @transform_6, window_bounds = array<i64: 512, 784>}, {pipeline_mode = #tpu.pipeline_mode<synchronous>, transform_indices = @transform_7, window_bounds = array<i64: 1, 784>}, {transform_indices = @transform_8, window_bounds = array<i64: 8, 784>}]} {
    %c0 = arith.constant 0 : index
    %c0_0 = arith.constant 0 : index
    %0 = vector.load %arg1[%c0, %c0_0] : memref<8x144xf32, #tpu.memory_space<vmem>>, vector<8x144xf32>
    %c0_1 = arith.constant 0 : index
    %c0_2 = arith.constant 0 : index
    %1 = vector.load %arg2[%c0_1, %c0_2] : memref<1x144xf32, #tpu.memory_space<vmem>>, vector<1x144xf32>
    %c0_3 = arith.constant 0 : index
    %c0_4 = arith.constant 0 : index
    %2 = vector.load %arg3[%c0_3, %c0_4] : memref<1x144xf32, #tpu.memory_space<vmem>>, vector<1x144xf32>
    %cst = arith.constant dense<0.000000e+00> : vector<8xf32>
    %3 = vector.multi_reduction <add>, %0, %cst [1] : vector<8x144xf32> to vector<8xf32>
    %4 = vector.shape_cast %3 : vector<8xf32> to vector<8x1xf32>
    %cst_5 = arith.constant 1.440000e+02 : f32
    %5 = vector.broadcast %cst_5 : f32 to vector<8x1xf32>
    %6 = arith.divf %4, %5 : vector<8x1xf32>
    %7 = arith.mulf %0, %0 : vector<8x144xf32>
    %cst_6 = arith.constant dense<0.000000e+00> : vector<8xf32>
    %8 = vector.multi_reduction <add>, %7, %cst_6 [1] : vector<8x144xf32> to vector<8xf32>
    %9 = vector.shape_cast %8 : vector<8xf32> to vector<8x1xf32>
    %cst_7 = arith.constant 1.440000e+02 : f32
    %10 = vector.broadcast %cst_7 : f32 to vector<8x1xf32>
    %11 = arith.divf %9, %10 : vector<8x1xf32>
    %12 = arith.mulf %6, %6 : vector<8x1xf32>
    %13 = arith.subf %11, %12 : vector<8x1xf32>
    %14 = vector.broadcast %6 : vector<8x1xf32> to vector<8x144xf32>
    %15 = arith.subf %0, %14 : vector<8x144xf32>
    %cst_8 = arith.constant 9.99999974E-6 : f32
    %16 = vector.broadcast %cst_8 : f32 to vector<8x1xf32>
    %17 = arith.addf %13, %16 : vector<8x1xf32>
    %18 = math.rsqrt %17 : vector<8x1xf32>
    %19 = vector.broadcast %18 : vector<8x1xf32> to vector<8x144xf32>
    %20 = arith.mulf %15, %19 : vector<8x144xf32>
    %21 = vector.broadcast %1 : vector<1x144xf32> to vector<8x144xf32>
    %22 = arith.mulf %20, %21 : vector<8x144xf32>
    %23 = vector.broadcast %2 : vector<1x144xf32> to vector<8x144xf32>
    %24 = arith.addf %22, %23 : vector<8x144xf32>
    %25 = arith.truncf %24 : vector<8x144xf32> to vector<8x144xbf16>
    %c0_9 = arith.constant 0 : index
    %c0_10 = arith.constant 0 : index
    %26 = vector.load %arg4[%c0_9, %c0_10] : memref<144x512xbf16, #tpu.memory_space<vmem>>, vector<144x512xbf16>
    %cst_11 = arith.constant dense<0.000000e+00> : vector<8x512xf32>
    %27 = tpu.matmul %25, %26, %cst_11 {dimension_numbers = #tpu.dot_dimension_numbers<[1], [0], [0], [1], [0, 0, 1, 1], [], []>} : vector<8x144xbf16>, vector<144x512xbf16>, vector<8x512xf32> -> vector<8x512xf32>
    %28 = arith.truncf %27 : vector<8x512xf32> to vector<8x512xbf16>
    %29 = arith.negf %28 : vector<8x512xbf16>
    %30 = math.exp %29 : vector<8x512xbf16>
    %cst_12 = arith.constant 1.000000e+00 : bf16
    %31 = vector.broadcast %cst_12 : bf16 to vector<8x512xbf16>
    %32 = arith.addf %31, %30 : vector<8x512xbf16>
    %33 = arith.divf %31, %32 : vector<8x512xbf16>
    %34 = arith.extf %33 : vector<8x512xbf16> to vector<8x512xf32>
    %c0_13 = arith.constant 0 : index
    %c0_14 = arith.constant 0 : index
    %35 = vector.load %arg5[%c0_13, %c0_14] : memref<1x512xf32, #tpu.memory_space<vmem>>, vector<1x512xf32>
    %c0_15 = arith.constant 0 : index
    %c0_16 = arith.constant 0 : index
    %36 = vector.load %arg6[%c0_15, %c0_16] : memref<1x512xf32, #tpu.memory_space<vmem>>, vector<1x512xf32>
    %cst_17 = arith.constant dense<0.000000e+00> : vector<8xf32>
    %37 = vector.multi_reduction <add>, %34, %cst_17 [1] : vector<8x512xf32> to vector<8xf32>
    %38 = vector.shape_cast %37 : vector<8xf32> to vector<8x1xf32>
    %cst_18 = arith.constant 5.120000e+02 : f32
    %39 = vector.broadcast %cst_18 : f32 to vector<8x1xf32>
    %40 = arith.divf %38, %39 : vector<8x1xf32>
    %41 = arith.mulf %34, %34 : vector<8x512xf32>
    %cst_19 = arith.constant dense<0.000000e+00> : vector<8xf32>
    %42 = vector.multi_reduction <add>, %41, %cst_19 [1] : vector<8x512xf32> to vector<8xf32>
    %43 = vector.shape_cast %42 : vector<8xf32> to vector<8x1xf32>
    %cst_20 = arith.constant 5.120000e+02 : f32
    %44 = vector.broadcast %cst_20 : f32 to vector<8x1xf32>
    %45 = arith.divf %43, %44 : vector<8x1xf32>
    %46 = arith.mulf %40, %40 : vector<8x1xf32>
    %47 = arith.subf %45, %46 : vector<8x1xf32>
    %48 = vector.broadcast %40 : vector<8x1xf32> to vector<8x512xf32>
    %49 = arith.subf %34, %48 : vector<8x512xf32>
    %cst_21 = arith.constant 9.99999974E-6 : f32
    %50 = vector.broadcast %cst_21 : f32 to vector<8x1xf32>
    %51 = arith.addf %47, %50 : vector<8x1xf32>
    %52 = math.rsqrt %51 : vector<8x1xf32>
    %53 = vector.broadcast %52 : vector<8x1xf32> to vector<8x512xf32>
    %54 = arith.mulf %49, %53 : vector<8x512xf32>
    %55 = vector.broadcast %35 : vector<1x512xf32> to vector<8x512xf32>
    %56 = arith.mulf %54, %55 : vector<8x512xf32>
    %57 = vector.broadcast %36 : vector<1x512xf32> to vector<8x512xf32>
    %58 = arith.addf %56, %57 : vector<8x512xf32>
    %59 = arith.truncf %58 : vector<8x512xf32> to vector<8x512xbf16>
    %c0_22 = arith.constant 0 : index
    %c0_23 = arith.constant 0 : index
    %60 = vector.load %arg7[%c0_22, %c0_23] : memref<512x784xbf16, #tpu.memory_space<vmem>>, vector<512x784xbf16>
    %cst_24 = arith.constant dense<0.000000e+00> : vector<8x784xf32>
    %61 = tpu.matmul %59, %60, %cst_24 {dimension_numbers = #tpu.dot_dimension_numbers<[1], [0], [0], [1], [0, 0, 1, 1], [], []>} : vector<8x512xbf16>, vector<512x784xbf16>, vector<8x784xf32> -> vector<8x784xf32>
    %c0_25 = arith.constant 0 : index
    %c0_26 = arith.constant 0 : index
    %62 = vector.load %arg8[%c0_25, %c0_26] : memref<1x784xf32, #tpu.memory_space<vmem>>, vector<1x784xf32>
    %63 = vector.broadcast %62 : vector<1x784xf32> to vector<8x784xf32>
    %64 = arith.addf %61, %63 : vector<8x784xf32>
    %c0_27 = arith.constant 0 : index
    %c0_28 = arith.constant 0 : index
    %65 = vector.load %arg9[%c0_27, %c0_28] : memref<8x784xf32, #tpu.memory_space<vmem>>, vector<8x784xf32>
    tpu.vector_store %arg9[%c0_27, %c0_28], %64 {strides = array<i32>} : memref<8x784xf32, #tpu.memory_space<vmem>>, vector<8x784xf32>,
    return
  }
  func.func @transform_0(%arg0: i32) -> (i32, i32) {
    %c0_i32 = arith.constant 0 : i32
    %c0_i32_0 = arith.constant 0 : i32
    return %arg0, %c0_i32 : i32, i32
  }
  func.func @transform_1(%arg0: i32) -> (i32, i32) {
    %c0_i32 = arith.constant 0 : i32
    %c0_i32_0 = arith.constant 0 : i32
    %c0_i32_1 = arith.constant 0 : i32
    return %c0_i32, %c0_i32_0 : i32, i32
  }
  func.func @transform_2(%arg0: i32) -> (i32, i32) {
    %c0_i32 = arith.constant 0 : i32
    %c0_i32_0 = arith.constant 0 : i32
    %c0_i32_1 = arith.constant 0 : i32
    return %c0_i32, %c0_i32_0 : i32, i32
  }
  func.func @transform_3(%arg0: i32) -> (i32, i32) {
    %c0_i32 = arith.constant 0 : i32
    %c0_i32_0 = arith.constant 0 : i32
    %c0_i32_1 = arith.constant 0 : i32
    return %c0_i32, %c0_i32_0 : i32, i32
  }
  func.func @transform_4(%arg0: i32) -> (i32, i32) {
    %c0_i32 = arith.constant 0 : i32
    %c0_i32_0 = arith.constant 0 : i32
    %c0_i32_1 = arith.constant 0 : i32
    return %c0_i32, %c0_i32_0 : i32, i32
  }
  func.func @transform_5(%arg0: i32) -> (i32, i32) {
    %c0_i32 = arith.constant 0 : i32
    %c0_i32_0 = arith.constant 0 : i32
    %c0_i32_1 = arith.constant 0 : i32
    return %c0_i32, %c0_i32_0 : i32, i32
  }
  func.func @transform_6(%arg0: i32) -> (i32, i32) {
    %c0_i32 = arith.constant 0 : i32
    %c0_i32_0 = arith.constant 0 : i32
    %c0_i32_1 = arith.constant 0 : i32
    return %c0_i32, %c0_i32_0 : i32, i32
  }
  func.func @transform_7(%arg0: i32) -> (i32, i32) {
    %c0_i32 = arith.constant 0 : i32
    %c0_i32_0 = arith.constant 0 : i32
    %c0_i32_1 = arith.constant 0 : i32
    return %c0_i32, %c0_i32_0 : i32, i32
  }
  func.func @transform_8(%arg0: i32) -> (i32, i32) {
    %c0_i32 = arith.constant 0 : i32
    %c0_i32_0 = arith.constant 0 : i32
    return %arg0, %c0_i32 : i32, i32
  }
}

</mosaic_0001>

<llo_original>
// kernel: tpu_custom_call.1
$region0: #{tpu_custom_call.1}
  #allocation0 [shape = 'u32[]', space=smem, size = 0x4, offset = 0x4, fixed_abs, tag = 'smem constant byte address 0x4 - core index']
  #allocation1 [shape = 'u32[144,128]{1,0:T(1,128)}', space=vmem, size = 0x12000, scoped, tag = 'internal scratch']
  %s0 = inlined_call_operand.vmem [shape: f32[8,144], index: 0, kind: input, shape index: {}]
  %s1 = inlined_call_operand.vmem [shape: f32[1,144], index: 1, kind: input, shape index: {}]
  %s2 = inlined_call_operand.vmem [shape: f32[1,144], index: 2, kind: input, shape index: {}]
  %s3 = inlined_call_operand.vmem [shape: bf16[144,512], index: 3, kind: input, shape index: {}]
  %s4 = inlined_call_operand.vmem [shape: f32[1,512], index: 4, kind: input, shape index: {}]
  %s5 = inlined_call_operand.vmem [shape: f32[1,512], index: 5, kind: input, shape index: {}]
  %s6 = inlined_call_operand.vmem [shape: bf16[512,784], index: 6, kind: input, shape index: {}]
  %s7 = inlined_call_operand.vmem [shape: f32[1,784], index: 7, kind: input, shape index: {}]
  %s8 = inlined_call_operand.hbm [shape: f32[8,784], index: 8, kind: output, shape index: {}]
  %s9 = sld [smem:[#allocation0]]
  $region42: #{tpu_custom_call.1} parent=0
    _
  %s11 = ssub.s32 1, %s9
  %s12 = scalar_select 0, %s11, %s9
  $region1: #{tpu_custom_call.1} parent=0
    #allocation2 [shape = 'u8[28672]{0}', space=vmem, size = 0x7000, scoped, tag = 'output window, operand 0, single buffered']
    #allocation3 [shape = 's32[1]{0}', space=sflag, size = 0x4, scoped, tag = 'scoped memory for tpu_custom_call.1']
    %13 = vsyncpa [#allocation3], 0
    // Predicated region
    $region2: #{tpu_custom_call.1} parent=1 // pred_check
      _
    $region3: #{tpu_custom_call.1} parent=1 // pred_check_branch
      %15 = sbr.rel (0) target = $region5
    $region4: #{tpu_custom_call.1} parent=1 // pred_region
      _
    $region5: #{tpu_custom_call.1} parent=1 // pred_fallthru
      _
    // Predicated region
    $region6: #{tpu_custom_call.1} parent=1 // pred_check
      _
    $region7: #{tpu_custom_call.1} parent=1 // pred_check_branch
      %17 = sbr.rel (0) target = $region9
    $region8: #{tpu_custom_call.1} parent=1 // pred_region
      _
    $region9: #{tpu_custom_call.1} parent=1 // pred_fallthru
      _
    // Predicated region
    $region10: #{tpu_custom_call.1} parent=1 // pred_check
      _
    $region11: #{tpu_custom_call.1} parent=1 // pred_check_branch
      %19 = sbr.rel (0) target = $region13
    $region12: #{tpu_custom_call.1} parent=1 // pred_region
      _
    $region13: #{tpu_custom_call.1} parent=1 // pred_fallthru
      _
    // Predicated region
    $region14: #{tpu_custom_call.1} parent=1 // pred_check
      _
    $region15: #{tpu_custom_call.1} parent=1 // pred_check_branch
      %21 = sbr.rel (0) target = $region17
    $region16: #{tpu_custom_call.1} parent=1 // pred_region
      _
    $region17: #{tpu_custom_call.1} parent=1 // pred_fallthru
      _
    // Predicated region
    $region18: #{tpu_custom_call.1} parent=1 // pred_check
      _
    $region19: #{tpu_custom_call.1} parent=1 // pred_check_branch
      %23 = sbr.rel (0) target = $region21
    $region20: #{tpu_custom_call.1} parent=1 // pred_region
      _
    $region21: #{tpu_custom_call.1} parent=1 // pred_fallthru
      _
    // Predicated region
    $region22: #{tpu_custom_call.1} parent=1 // pred_check
      _
    $region23: #{tpu_custom_call.1} parent=1 // pred_check_branch
      %25 = sbr.rel (0) target = $region25
    $region24: #{tpu_custom_call.1} parent=1 // pred_region
      _
    $region25: #{tpu_custom_call.1} parent=1 // pred_fallthru
      _
    // Predicated region
    $region26: #{tpu_custom_call.1} parent=1 // pred_check
      _
    $region27: #{tpu_custom_call.1} parent=1 // pred_check_branch
      %27 = sbr.rel (0) target = $region29
    $region28: #{tpu_custom_call.1} parent=1 // pred_region
      _
    $region29: #{tpu_custom_call.1} parent=1 // pred_fallthru
      _
    // Predicated region
    $region30: #{tpu_custom_call.1} parent=1 // pred_check
      _
    $region31: #{tpu_custom_call.1} parent=1 // pred_check_branch
      %29 = sbr.rel (0) target = $region33
    $region32: #{tpu_custom_call.1} parent=1 // pred_region
      _
    $region33: #{tpu_custom_call.1} parent=1 // pred_fallthru
      _
    %v32 = vld [vmem:[%s0] sm:$0xff]
    %v33 = vld [vmem:[%s0 + $0x8] sm:$0xff]
    %v34 = vld [vmem:[%s1] sm:$0x3]
    %v35 = vld [vmem:[%s2] sm:$0x3]
    %vm36 = vcmask 130048
    %v37 = vsel %vm36, %v33, 0.0
    %v38 = vadd.f32 %v32, %v37
    %39 = vadd.xlane.f32.xlu0 %v38
    %v40 = vpop.xlane.xlu0 %39
    %v41 = vrcp.pop 144.0
    %v42 = vmul.f32 %v40, %v41
    %v43 = vmul.f32 %v32, %v32
    %v44 = vmul.f32 %v33, %v33
    %v45 = vsel %vm36, %v44, 0.0
    %v46 = vadd.f32 %v43, %v45
    %47 = vadd.xlane.f32.xlu0 %v46
    %v48 = vpop.xlane.xlu0 %47
    %v49 = vmul.f32 %v48, %v41
    %v50 = vmul.f32 %v42, %v42
    %v51 = vsub.f32 %v49, %v50
    %v52 = vsub.f32 %v32, %v42
    %v53 = vsub.f32 %v33, %v42
    %v54 = vadd.f32 %v51, 1e-05
    %v55 = vrsqrt.pop %v54
    %v56 = vmul.f32 %v52, %v55
    %v57 = vmul.f32 %v53, %v55
    %v59 = vlaneseq
    %v60 = vshrl.u32 %v59, 7
    %v61 = vsub.s32 0, %v60
    %v62 = vrot.slane %v34, %v61
    %v63 = vlaneseq
    %v64 = vshrl.u32 %v63, 7
    %v65 = vsub.s32 1, %v64
    %v66 = vrot.slane %v34, %v65
    %v69 = vmul.f32 %v56, %v62
    %v70 = vmul.f32 %v57, %v66
    %v72 = vlaneseq
    %v73 = vshrl.u32 %v72, 7
    %v74 = vsub.s32 0, %v73
    %v75 = vrot.slane %v35, %v74
    %v76 = vlaneseq
    %v77 = vshrl.u32 %v76, 7
    %v78 = vsub.s32 1, %v77
    %v79 = vrot.slane %v35, %v78
    %v82 = vadd.f32 %v69, %v75
    %v83 = vadd.f32 %v70, %v79
    %v84 = vpack.c.bf16 %v82, %v82
    %v85 = vpack.c.bf16 %v83, %v83
    %v86 = vld [vmem:[%s3] sm:$0xff]
    %v87 = vld [vmem:[%s3 + $0x8] sm:$0xff]
    %v88 = vld [vmem:[%s3 + $0x10] sm:$0xff]
    %v89 = vld [vmem:[%s3 + $0x18] sm:$0xff]
    %v90 = vld [vmem:[%s3 + $0x20] sm:$0xff]
    %v91 = vld [vmem:[%s3 + $0x28] sm:$0xff]
    %v92 = vld [vmem:[%s3 + $0x30] sm:$0xff]
    %v93 = vld [vmem:[%s3 + $0x38] sm:$0xff]
    %v94 = vld [vmem:[%s3 + $0x40] sm:$0xff]
    %v95 = vld [vmem:[%s3 + $0x48] sm:$0xff]
    %v96 = vld [vmem:[%s3 + $0x50] sm:$0xff]
    %v97 = vld [vmem:[%s3 + $0x58] sm:$0xff]
    %v98 = vld [vmem:[%s3 + $0x60] sm:$0xff]
    %v99 = vld [vmem:[%s3 + $0x68] sm:$0xff]
    %v100 = vld [vmem:[%s3 + $0x70] sm:$0xff]
    %v101 = vld [vmem:[%s3 + $0x78] sm:$0xff]
    %v102 = vld [vmem:[%s3 + $0x80] sm:$0xff]
    %v103 = vld [vmem:[%s3 + $0x88] sm:$0xff]
    %v104 = vld [vmem:[%s3 + $0x90] sm:$0xff]
    %v105 = vld [vmem:[%s3 + $0x98] sm:$0xff]
    %v106 = vld [vmem:[%s3 + $0xa0] sm:$0xff]
    %v107 = vld [vmem:[%s3 + $0xa8] sm:$0xff]
    %v108 = vld [vmem:[%s3 + $0xb0] sm:$0xff]
    %v109 = vld [vmem:[%s3 + $0xb8] sm:$0xff]
    %v110 = vld [vmem:[%s3 + $0xc0] sm:$0xff]
    %v111 = vld [vmem:[%s3 + $0xc8] sm:$0xff]
    %v112 = vld [vmem:[%s3 + $0xd0] sm:$0xff]
    %v113 = vld [vmem:[%s3 + $0xd8] sm:$0xff]
    %v114 = vld [vmem:[%s3 + $0xe0] sm:$0xff]
    %v115 = vld [vmem:[%s3 + $0xe8] sm:$0xff]
    %v116 = vld [vmem:[%s3 + $0xf0] sm:$0xff]
    %v117 = vld [vmem:[%s3 + $0xf8] sm:$0xff]
    %v118 = vld [vmem:[%s3 + $0x100] sm:$0xff]
    %v119 = vld [vmem:[%s3 + $0x108] sm:$0xff]
    %v120 = vld [vmem:[%s3 + $0x110] sm:$0xff]
    %v121 = vld [vmem:[%s3 + $0x118] sm:$0xff]
    %v158 = vunpack.c.l.b16 %v86
    %v159 = vunpack.c.h.b16 %v86
    %v160 = vunpack.c.l.b16 %v87
    %v161 = vunpack.c.h.b16 %v87
    %v162 = vunpack.c.l.b16 %v88
    %v163 = vunpack.c.h.b16 %v88
    %v164 = vunpack.c.l.b16 %v89
    %v165 = vunpack.c.h.b16 %v89
    %v166 = vunpack.c.l.b16 %v90
    %v167 = vunpack.c.h.b16 %v90
    %v168 = vunpack.c.l.b16 %v91
    %v169 = vunpack.c.h.b16 %v91
    %v170 = vunpack.c.l.b16 %v92
    %v171 = vunpack.c.h.b16 %v92
    %v172 = vunpack.c.l.b16 %v93
    %v173 = vunpack.c.h.b16 %v93
    %v174 = vunpack.c.l.b16 %v94
    %v175 = vunpack.c.h.b16 %v94
    %v176 = vunpack.c.l.b16 %v95
    %v177 = vunpack.c.h.b16 %v95
    %v178 = vunpack.c.l.b16 %v96
    %v179 = vunpack.c.h.b16 %v96
    %v180 = vunpack.c.l.b16 %v97
    %v181 = vunpack.c.h.b16 %v97
    %v182 = vunpack.c.l.b16 %v98
    %v183 = vunpack.c.h.b16 %v98
    %v184 = vunpack.c.l.b16 %v99
    %v185 = vunpack.c.h.b16 %v99
    %v186 = vunpack.c.l.b16 %v100
    %v187 = vunpack.c.h.b16 %v100
    %v188 = vunpack.c.l.b16 %v101
    %v189 = vunpack.c.h.b16 %v101
    %v190 = vunpack.c.l.b16 %v102
    %v191 = vunpack.c.h.b16 %v102
    %v192 = vunpack.c.l.b16 %v103
    %v193 = vunpack.c.h.b16 %v103
    %v194 = vunpack.c.l.b16 %v104
    %v195 = vunpack.c.h.b16 %v104
    %v196 = vunpack.c.l.b16 %v105
    %v197 = vunpack.c.h.b16 %v105
    %v198 = vunpack.c.l.b16 %v106
    %v199 = vunpack.c.h.b16 %v106
    %v200 = vunpack.c.l.b16 %v107
    %v201 = vunpack.c.h.b16 %v107
    %v202 = vunpack.c.l.b16 %v108
    %v203 = vunpack.c.h.b16 %v108
    %v204 = vunpack.c.l.b16 %v109
    %v205 = vunpack.c.h.b16 %v109
    %v206 = vunpack.c.l.b16 %v110
    %v207 = vunpack.c.h.b16 %v110
    %v208 = vunpack.c.l.b16 %v111
    %v209 = vunpack.c.h.b16 %v111
    %v210 = vunpack.c.l.b16 %v112
    %v211 = vunpack.c.h.b16 %v112
    %v212 = vunpack.c.l.b16 %v113
    %v213 = vunpack.c.h.b16 %v113
    %v214 = vunpack.c.l.b16 %v114
    %v215 = vunpack.c.h.b16 %v114
    %v216 = vunpack.c.l.b16 %v115
    %v217 = vunpack.c.h.b16 %v115
    %v218 = vunpack.c.l.b16 %v116
    %v219 = vunpack.c.h.b16 %v116
    %v220 = vunpack.c.l.b16 %v117
    %v221 = vunpack.c.h.b16 %v117
    %v222 = vunpack.c.l.b16 %v118
    %v223 = vunpack.c.h.b16 %v118
    %v224 = vunpack.c.l.b16 %v119
    %v225 = vunpack.c.h.b16 %v119
    %v226 = vunpack.c.l.b16 %v120
    %v227 = vunpack.c.h.b16 %v120
    %v228 = vunpack.c.l.b16 %v121
    %v229 = vunpack.c.h.b16 %v121
    %v230 = vpack.c.b16 %v162, %v158
    %v231 = vpack.c.b16 %v163, %v159
    %v232 = vpack.c.b16 %v164, %v160
    %v233 = vpack.c.b16 %v165, %v161
    %v234 = vpack.c.b16 %v170, %v166
    %v235 = vpack.c.b16 %v171, %v167
    %v236 = vpack.c.b16 %v172, %v168
    %v237 = vpack.c.b16 %v173, %v169
    %v238 = vpack.c.b16 %v178, %v174
    %v239 = vpack.c.b16 %v179, %v175
    %v240 = vpack.c.b16 %v180, %v176
    %v241 = vpack.c.b16 %v181, %v177
    %v242 = vpack.c.b16 %v186, %v182
    %v243 = vpack.c.b16 %v187, %v183
    %v244 = vpack.c.b16 %v188, %v184
    %v245 = vpack.c.b16 %v189, %v185
    %v246 = vpack.c.b16 %v194, %v190
    %v247 = vpack.c.b16 %v195, %v191
    %v248 = vpack.c.b16 %v196, %v192
    %v249 = vpack.c.b16 %v197, %v193
    %v250 = vpack.c.b16 %v202, %v198
    %v251 = vpack.c.b16 %v203, %v199
    %v252 = vpack.c.b16 %v204, %v200
    %v253 = vpack.c.b16 %v205, %v201
    %v254 = vpack.c.b16 %v210, %v206
    %v255 = vpack.c.b16 %v211, %v207
    %v256 = vpack.c.b16 %v212, %v208
    %v257 = vpack.c.b16 %v213, %v209
    %v258 = vpack.c.b16 %v218, %v214
    %v259 = vpack.c.b16 %v219, %v215
    %v260 = vpack.c.b16 %v220, %v216
    %v261 = vpack.c.b16 %v221, %v217
    %v262 = vpack.c.b16 %v226, %v222
    %v263 = vpack.c.b16 %v227, %v223
    %v264 = vpack.c.b16 %v228, %v224
    %v265 = vpack.c.b16 %v229, %v225
    %v303 = vsel %vm36, %v85, 0
    %305 = vmatprep.subr.bf16.mxu0 %v259
    %306 = vmatpush1.bf16.msra.mxu0 %v258
    %307 = vmatprep.subr.bf16.mxu0 %v255
    %308 = vmatpush1.bf16.msra.mxu0 %v254
    %309 = vmatprep.subr.bf16.mxu0 %v251
    %310 = vmatpush1.bf16.msra.mxu0 %v250
    %311 = vmatprep.subr.bf16.mxu0 %v247
    %312 = vmatpush1.bf16.msra.mxu0 %v246
    %313 = vmatprep.subr.bf16.mxu0 %v243
    %314 = vmatpush1.bf16.msra.mxu0 %v242
    %315 = vmatprep.subr.bf16.mxu0 %v239
    %316 = vmatpush1.bf16.msra.mxu0 %v238
    %317 = vmatprep.subr.bf16.mxu0 %v235
    %318 = vmatpush1.bf16.msra.mxu0 %v234
    %319 = vmatprep.subr.bf16.mxu0 %v231
    %320 = vmatpush1.bf16.msra.mxu0 %v230
    %321 = vmatprep.subr.bf16.mxu0 0
    %322 = vmatpush2.bf16.msra.mxu0 0
    %323 = vmatprep.subr.bf16.mxu0 0
    %324 = vmatpush2.bf16.msra.mxu0 0
    %325 = vmatprep.subr.bf16.mxu0 0
    %326 = vmatpush2.bf16.msra.mxu0 0
    %327 = vmatprep.subr.bf16.mxu0 0
    %328 = vmatpush2.bf16.msra.mxu0 0
    %329 = vmatprep.subr.bf16.mxu0 0
    %330 = vmatpush2.bf16.msra.mxu0 0
    %331 = vmatprep.subr.bf16.mxu0 0
    %332 = vmatpush2.bf16.msra.mxu0 0
    %333 = vmatprep.subr.bf16.mxu0 0
    %334 = vmatpush2.bf16.msra.mxu0 0
    %335 = vmatprep.subr.bf16.mxu0 %v263
    %336 = vmatpush2.bf16.msra.mxu0 %v262
    %337 = vmatprep.mubr.bf16.mxu0 %v303
    %338 = vmatmul.mubr.bf16.gmra.mxu0 %v84
    %v339 = vpop.f32.mrf.mxu0
    %v340 = vadd.f32 0.0, %v339
    %v341 = vpop.f32.mrf.mxu0
    %v342 = vadd.f32 0.0, %v341
    %v343 = vpop.f32.mrf.mxu0
    %v344 = vpop.f32.mrf.mxu0
    %345 = vdwg.mxu0
    %346 = vmatprep.subr.bf16.mxu0 %v261
    %347 = vmatpush1.bf16.msra.mxu0 %v260
    %348 = vmatprep.subr.bf16.mxu0 %v257
    %349 = vmatpush1.bf16.msra.mxu0 %v256
    %350 = vmatprep.subr.bf16.mxu0 %v253
    %351 = vmatpush1.bf16.msra.mxu0 %v252
    %352 = vmatprep.subr.bf16.mxu0 %v249
    %353 = vmatpush1.bf16.msra.mxu0 %v248
    %354 = vmatprep.subr.bf16.mxu0 %v245
    %355 = vmatpush1.bf16.msra.mxu0 %v244
    %356 = vmatprep.subr.bf16.mxu0 %v241
    %357 = vmatpush1.bf16.msra.mxu0 %v240
    %358 = vmatprep.subr.bf16.mxu0 %v237
    %359 = vmatpush1.bf16.msra.mxu0 %v236
    %360 = vmatprep.subr.bf16.mxu0 %v233
    %361 = vmatpush1.bf16.msra.mxu0 %v232
    %362 = vmatprep.subr.bf16.mxu0 0
    %363 = vmatpush2.bf16.msra.mxu0 0
    %364 = vmatprep.subr.bf16.mxu0 0
    %365 = vmatpush2.bf16.msra.mxu0 0
    %366 = vmatprep.subr.bf16.mxu0 0
    %367 = vmatpush2.bf16.msra.mxu0 0
    %368 = vmatprep.subr.bf16.mxu0 0
    %369 = vmatpush2.bf16.msra.mxu0 0
    %370 = vmatprep.subr.bf16.mxu0 0
    %371 = vmatpush2.bf16.msra.mxu0 0
    %372 = vmatprep.subr.bf16.mxu0 0
    %373 = vmatpush2.bf16.msra.mxu0 0
    %374 = vmatprep.subr.bf16.mxu0 0
    %375 = vmatpush2.bf16.msra.mxu0 0
    %376 = vmatprep.subr.bf16.mxu0 %v265
    %377 = vmatpush2.bf16.msra.mxu0 %v264
    %378 = vmatprep.mubr.bf16.mxu0 %v303
    %379 = vmatmul.mubr.bf16.gmra.mxu0 %v84
    %v380 = vpop.f32.mrf.mxu0
    %v381 = vadd.f32 0.0, %v380
    %v382 = vpop.f32.mrf.mxu0
    %v383 = vadd.f32 0.0, %v382
    %v384 = vpop.f32.mrf.mxu0
    %v385 = vpop.f32.mrf.mxu0
    %386 = vdwg.mxu0
    %v387 = vpack.c.bf16 %v340, %v340
    %v388 = vpack.c.bf16 %v342, %v342
    %v389 = vpack.c.bf16 %v381, %v381
    %v390 = vpack.c.bf16 %v383, %v383
    %v391 = vxor.u32 %v387, 2147516416
    %v392 = vxor.u32 %v388, 2147516416
    %v393 = vxor.u32 %v389, 2147516416
    %v394 = vxor.u32 %v390, 2147516416
    %v396 = vmul.bf16 %v391, 1069105081
    %v397 = vpow.bf16.pop %v396
    %v399 = vmul.bf16 %v392, 1069105081
    %v400 = vpow.bf16.pop %v399
    %v402 = vmul.bf16 %v393, 1069105081
    %v403 = vpow.bf16.pop %v402
    %v405 = vmul.bf16 %v394, 1069105081
    %v406 = vpow.bf16.pop %v405
    %v407 = vadd.bf16 %v397, 1065369472
    %v408 = vadd.bf16 %v400, 1065369472
    %v409 = vadd.bf16 %v403, 1065369472
    %v410 = vadd.bf16 %v406, 1065369472
    %v411 = vrcp.bf16.pop %v407
    %v412 = vmul.bf16 1065369472, %v411
    %v413 = vrcp.bf16.pop %v408
    %v414 = vmul.bf16 1065369472, %v413
    %v415 = vrcp.bf16.pop %v409
    %v416 = vmul.bf16 1065369472, %v415
    %v417 = vrcp.bf16.pop %v410
    %v418 = vmul.bf16 1065369472, %v417
    %v419 = vunpack.c.l.bf16 %v412
    %v420 = vunpack.c.l.bf16 %v414
    %v421 = vunpack.c.l.bf16 %v416
    %v422 = vunpack.c.l.bf16 %v418
    %v423 = vld [vmem:[%s4] sm:$0xf]
    %v424 = vld [vmem:[%s5] sm:$0xf]
    %v425 = vadd.f32 %v419, %v420
    %v426 = vadd.f32 %v425, %v421
    %v427 = vadd.f32 %v426, %v422
    %428 = vadd.xlane.f32.xlu0 %v427
    %v429 = vpop.xlane.xlu0 %428
    %v430 = vrcp.pop 512.0
    %v431 = vmul.f32 %v429, %v430
    %v432 = vmul.f32 %v419, %v419
    %v433 = vmul.f32 %v420, %v420
    %v434 = vmul.f32 %v421, %v421
    %v435 = vmul.f32 %v422, %v422
    %v436 = vadd.f32 %v432, %v433
    %v437 = vadd.f32 %v436, %v434
    %v438 = vadd.f32 %v437, %v435
    %439 = vadd.xlane.f32.xlu0 %v438
    %v440 = vpop.xlane.xlu0 %439
    %v441 = vmul.f32 %v440, %v430
    %v442 = vmul.f32 %v431, %v431
    %v443 = vsub.f32 %v441, %v442
    %v444 = vsub.f32 %v419, %v431
    %v445 = vsub.f32 %v420, %v431
    %v446 = vsub.f32 %v421, %v431
    %v447 = vsub.f32 %v422, %v431
    %v448 = vadd.f32 %v443, 1e-05
    %v449 = vrsqrt.pop %v448
    %v450 = vmul.f32 %v444, %v449
    %v451 = vmul.f32 %v445, %v449
    %v452 = vmul.f32 %v446, %v449
    %v453 = vmul.f32 %v447, %v449
    %v455 = vlaneseq
    %v456 = vshrl.u32 %v455, 7
    %v457 = vsub.s32 0, %v456
    %v458 = vrot.slane %v423, %v457
    %v459 = vlaneseq
    %v460 = vshrl.u32 %v459, 7
    %v461 = vsub.s32 1, %v460
    %v462 = vrot.slane %v423, %v461
    %v463 = vlaneseq
    %v464 = vshrl.u32 %v463, 7
    %v465 = vsub.s32 2, %v464
    %v466 = vrot.slane %v423, %v465
    %v467 = vlaneseq
    %v468 = vshrl.u32 %v467, 7
    %v469 = vsub.s32 3, %v468
    %v470 = vrot.slane %v423, %v469
    %v475 = vmul.f32 %v450, %v458
    %v476 = vmul.f32 %v451, %v462
    %v477 = vmul.f32 %v452, %v466
    %v478 = vmul.f32 %v453, %v470
    %v480 = vlaneseq
    %v481 = vshrl.u32 %v480, 7
    %v482 = vsub.s32 0, %v481
    %v483 = vrot.slane %v424, %v482
    %v484 = vlaneseq
    %v485 = vshrl.u32 %v484, 7
    %v486 = vsub.s32 1, %v485
    %v487 = vrot.slane %v424, %v486
    %v488 = vlaneseq
    %v489 = vshrl.u32 %v488, 7
    %v490 = vsub.s32 2, %v489
    %v491 = vrot.slane %v424, %v490
    %v492 = vlaneseq
    %v493 = vshrl.u32 %v492, 7
    %v494 = vsub.s32 3, %v493
    %v495 = vrot.slane %v424, %v494
    %v500 = vadd.f32 %v475, %v483
    %v501 = vadd.f32 %v476, %v487
    %v502 = vadd.f32 %v477, %v491
    %v503 = vadd.f32 %v478, %v495
    %v504 = vpack.c.bf16 %v500, %v500
    %v505 = vpack.c.bf16 %v501, %v501
    %v506 = vpack.c.bf16 %v502, %v502
    %v507 = vpack.c.bf16 %v503, %v503
    %v508 = vld [vmem:[%s6] sm:$0xff]
    %v509 = vld [vmem:[%s6 + $0x8] sm:$0xff]
    %v510 = vld [vmem:[%s6 + $0x10] sm:$0xff]
    %v511 = vld [vmem:[%s6 + $0x18] sm:$0xf]
    %v512 = vld [vmem:[%s6 + $0x1c] sm:$0xff]
    %v513 = vld [vmem:[%s6 + $0x24] sm:$0xff]
    %v514 = vld [vmem:[%s6 + $0x2c] sm:$0xff]
    %v515 = vld [vmem:[%s6 + $0x34] sm:$0xf]
    %v516 = vld [vmem:[%s6 + $0x38] sm:$0xff]
    %v517 = vld [vmem:[%s6 + $0x40] sm:$0xff]
    %v518 = vld [vmem:[%s6 + $0x48] sm:$0xff]
    %v519 = vld [vmem:[%s6 + $0x50] sm:$0xf]
    %v520 = vld [vmem:[%s6 + $0x54] sm:$0xff]
    %v521 = vld [vmem:[%s6 + $0x5c] sm:$0xff]
    %v522 = vld [vmem:[%s6 + $0x64] sm:$0xff]
    %v523 = vld [vmem:[%s6 + $0x6c] sm:$0xf]
    %v524 = vld [vmem:[%s6 + $0x70] sm:$0xff]
    %v525 = vld [vmem:[%s6 + $0x78] sm:$0xff]
    %v526 = vld [vmem:[%s6 + $0x80] sm:$0xff]
    %v527 = vld [vmem:[%s6 + $0x88] sm:$0xf]
    %v528 = vld [vmem:[%s6 + $0x8c] sm:$0xff]
    %v529 = vld [vmem:[%s6 + $0x94] sm:$0xff]
    %v530 = vld [vmem:[%s6 + $0x9c] sm:$0xff]
    %v531 = vld [vmem:[%s6 + $0xa4] sm:$0xf]
    %v532 = vld [vmem:[%s6 + $0xa8] sm:$0xff]
    %v533 = vld [vmem:[%s6 + $0xb0] sm:$0xff]
    %v534 = vld [vmem:[%s6 + $0xb8] sm:$0xff]
    %v535 = vld [vmem:[%s6 + $0xc0] sm:$0xf]
    %v536 = vld [vmem:[%s6 + $0xc4] sm:$0xff]
    %v537 = vld [vmem:[%s6 + $0xcc] sm:$0xff]
    %v538 = vld [vmem:[%s6 + $0xd4] sm:$0xff]
    %v539 = vld [vmem:[%s6 + $0xdc] sm:$0xf]
    %v540 = vld [vmem:[%s6 + $0xe0] sm:$0xff]
    %v541 = vld [vmem:[%s6 + $0xe8] sm:$0xff]
    %v542 = vld [vmem:[%s6 + $0xf0] sm:$0xff]
    %v543 = vld [vmem:[%s6 + $0xf8] sm:$0xf]
    %v544 = vld [vmem:[%s6 + $0xfc] sm:$0xff]
    %v545 = vld [vmem:[%s6 + $0x104] sm:$0xff]
    %v546 = vld [vmem:[%s6 + $0x10c] sm:$0xff]
    %v547 = vld [vmem:[%s6 + $0x114] sm:$0xf]
    %v548 = vld [vmem:[%s6 + $0x118] sm:$0xff]
    %v549 = vld [vmem:[%s6 + $0x120] sm:$0xff]
    %v550 = vld [vmem:[%s6 + $0x128] sm:$0xff]
    %v551 = vld [vmem:[%s6 + $0x130] sm:$0xf]
    %v552 = vld [vmem:[%s6 + $0x134] sm:$0xff]
    %v553 = vld [vmem:[%s6 + $0x13c] sm:$0xff]
    %v554 = vld [vmem:[%s6 + $0x144] sm:$0xff]
    %v555 = vld [vmem:[%s6 + $0x14c] sm:$0xf]
    %v556 = vld [vmem:[%s6 + $0x150] sm:$0xff]
    %v557 = vld [vmem:[%s6 + $0x158] sm:$0xff]
    %v558 = vld [vmem:[%s6 + $0x160] sm:$0xff]
    %v559 = vld [vmem:[%s6 + $0x168] sm:$0xf]
    %v560 = vld [vmem:[%s6 + $0x16c] sm:$0xff]
    %v561 = vld [vmem:[%s6 + $0x174] sm:$0xff]
    %v562 = vld [vmem:[%s6 + $0x17c] sm:$0xff]
    %v563 = vld [vmem:[%s6 + $0x184] sm:$0xf]
    %v564 = vld [vmem:[%s6 + $0x188] sm:$0xff]
    %v565 = vld [vmem:[%s6 + $0x190] sm:$0xff]
    %v566 = vld [vmem:[%s6 + $0x198] sm:$0xff]
    %v567 = vld [vmem:[%s6 + $0x1a0] sm:$0xf]
    %v568 = vld [vmem:[%s6 + $0x1a4] sm:$0xff]
    %v569 = vld [vmem:[%s6 + $0x1ac] sm:$0xff]
    %v570 = vld [vmem:[%s6 + $0x1b4] sm:$0xff]
    %v571 = vld [vmem:[%s6 + $0x1bc] sm:$0xf]
    %v572 = vld [vmem:[%s6 + $0x1c0] sm:$0xff]
    %v573 = vld [vmem:[%s6 + $0x1c8] sm:$0xff]
    %v574 = vld [vmem:[%s6 + $0x1d0] sm:$0xff]
    %v575 = vld [vmem:[%s6 + $0x1d8] sm:$0xf]
    %v576 = vld [vmem:[%s6 + $0x1dc] sm:$0xff]
    %v577 = vld [vmem:[%s6 + $0x1e4] sm:$0xff]
    %v578 = vld [vmem:[%s6 + $0x1ec] sm:$0xff]
    %v579 = vld [vmem:[%s6 + $0x1f4] sm:$0xf]
    %v580 = vld [vmem:[%s6 + $0x1f8] sm:$0xff]
    %v581 = vld [vmem:[%s6 + $0x200] sm:$0xff]
    %v582 = vld [vmem:[%s6 + $0x208] sm:$0xff]
    %v583 = vld [vmem:[%s6 + $0x210] sm:$0xf]
    %v584 = vld [vmem:[%s6 + $0x214] sm:$0xff]
    %v585 = vld [vmem:[%s6 + $0x21c] sm:$0xff]
    %v586 = vld [vmem:[%s6 + $0x224] sm:$0xff]
    %v587 = vld [vmem:[%s6 + $0x22c] sm:$0xf]
    %v588 = vld [vmem:[%s6 + $0x230] sm:$0xff]
    %v589 = vld [vmem:[%s6 + $0x238] sm:$0xff]
    %v590 = vld [vmem:[%s6 + $0x240] sm:$0xff]
    %v591 = vld [vmem:[%s6 + $0x248] sm:$0xf]
    %v592 = vld [vmem:[%s6 + $0x24c] sm:$0xff]
    %v593 = vld [vmem:[%s6 + $0x254] sm:$0xff]
    %v594 = vld [vmem:[%s6 + $0x25c] sm:$0xff]
    %v595 = vld [vmem:[%s6 + $0x264] sm:$0xf]
    %v596 = vld [vmem:[%s6 + $0x268] sm:$0xff]
    %v597 = vld [vmem:[%s6 + $0x270] sm:$0xff]
    %v598 = vld [vmem:[%s6 + $0x278] sm:$0xff]
    %v599 = vld [vmem:[%s6 + $0x280] sm:$0xf]
    %v600 = vld [vmem:[%s6 + $0x284] sm:$0xff]
    %v601 = vld [vmem:[%s6 + $0x28c] sm:$0xff]
    %v602 = vld [vmem:[%s6 + $0x294] sm:$0xff]
    %v603 = vld [vmem:[%s6 + $0x29c] sm:$0xf]
    %v604 = vld [vmem:[%s6 + $0x2a0] sm:$0xff]
    %v605 = vld [vmem:[%s6 + $0x2a8] sm:$0xff]
    %v606 = vld [vmem:[%s6 + $0x2b0] sm:$0xff]
    %v607 = vld [vmem:[%s6 + $0x2b8] sm:$0xf]
    %v608 = vld [vmem:[%s6 + $0x2bc] sm:$0xff]
    %v609 = vld [vmem:[%s6 + $0x2c4] sm:$0xff]
    %v610 = vld [vmem:[%s6 + $0x2cc] sm:$0xff]
    %v611 = vld [vmem:[%s6 + $0x2d4] sm:$0xf]
    %v612 = vld [vmem:[%s6 + $0x2d8] sm:$0xff]
    %v613 = vld [vmem:[%s6 + $0x2e0] sm:$0xff]
    %v614 = vld [vmem:[%s6 + $0x2e8] sm:$0xff]
    %v615 = vld [vmem:[%s6 + $0x2f0] sm:$0xf]
    %v616 = vld [vmem:[%s6 + $0x2f4] sm:$0xff]
    %v617 = vld [vmem:[%s6 + $0x2fc] sm:$0xff]
    %v618 = vld [vmem:[%s6 + $0x304] sm:$0xff]
    %v619 = vld [vmem:[%s6 + $0x30c] sm:$0xf]
    %v620 = vld [vmem:[%s6 + $0x310] sm:$0xff]
    %v621 = vld [vmem:[%s6 + $0x318] sm:$0xff]
    %v622 = vld [vmem:[%s6 + $0x320] sm:$0xff]
    %v623 = vld [vmem:[%s6 + $0x328] sm:$0xf]
    %v624 = vld [vmem:[%s6 + $0x32c] sm:$0xff]
    %v625 = vld [vmem:[%s6 + $0x334] sm:$0xff]
    %v626 = vld [vmem:[%s6 + $0x33c] sm:$0xff]
    %v627 = vld [vmem:[%s6 + $0x344] sm:$0xf]
    %v628 = vld [vmem:[%s6 + $0x348] sm:$0xff]
    %v629 = vld [vmem:[%s6 + $0x350] sm:$0xff]
    %v630 = vld [vmem:[%s6 + $0x358] sm:$0xff]
    %v631 = vld [vmem:[%s6 + $0x360] sm:$0xf]
    %v632 = vld [vmem:[%s6 + $0x364] sm:$0xff]
    %v633 = vld [vmem:[%s6 + $0x36c] sm:$0xff]
    %v634 = vld [vmem:[%s6 + $0x374] sm:$0xff]
    %v635 = vld [vmem:[%s6 + $0x37c] sm:$0xf]
    %v636 = vld [vmem:[%s6 + $0x380] sm:$0xff]
    %v637 = vld [vmem:[%s6 + $0x388] sm:$0xff]
    %v638 = vld [vmem:[%s6 + $0x390] sm:$0xff]
    %v639 = vld [vmem:[%s6 + $0x398] sm:$0xf]
    %v640 = vld [vmem:[%s6 + $0x39c] sm:$0xff]
    %v641 = vld [vmem:[%s6 + $0x3a4] sm:$0xff]
    %v642 = vld [vmem:[%s6 + $0x3ac] sm:$0xff]
    %v643 = vld [vmem:[%s6 + $0x3b4] sm:$0xf]
    %v644 = vld [vmem:[%s6 + $0x3b8] sm:$0xff]
    %v645 = vld [vmem:[%s6 + $0x3c0] sm:$0xff]
    %v646 = vld [vmem:[%s6 + $0x3c8] sm:$0xff]
    %v647 = vld [vmem:[%s6 + $0x3d0] sm:$0xf]
    %v648 = vld [vmem:[%s6 + $0x3d4] sm:$0xff]
    %v649 = vld [vmem:[%s6 + $0x3dc] sm:$0xff]
    %v650 = vld [vmem:[%s6 + $0x3e4] sm:$0xff]
    %v651 = vld [vmem:[%s6 + $0x3ec] sm:$0xf]
    %v652 = vld [vmem:[%s6 + $0x3f0] sm:$0xff]
    %v653 = vld [vmem:[%s6 + $0x3f8] sm:$0xff]
    %v654 = vld [vmem:[%s6 + $0x400] sm:$0xff]
    %v655 = vld [vmem:[%s6 + $0x408] sm:$0xf]
    %v656 = vld [vmem:[%s6 + $0x40c] sm:$0xff]
    %v657 = vld [vmem:[%s6 + $0x414] sm:$0xff]
    %v658 = vld [vmem:[%s6 + $0x41c] sm:$0xff]
    %v659 = vld [vmem:[%s6 + $0x424] sm:$0xf]
    %v660 = vld [vmem:[%s6 + $0x428] sm:$0xff]
    %v661 = vld [vmem:[%s6 + $0x430] sm:$0xff]
    %v662 = vld [vmem:[%s6 + $0x438] sm:$0xff]
    %v663 = vld [vmem:[%s6 + $0x440] sm:$0xf]
    %v664 = vld [vmem:[%s6 + $0x444] sm:$0xff]
    %v665 = vld [vmem:[%s6 + $0x44c] sm:$0xff]
    %v666 = vld [vmem:[%s6 + $0x454] sm:$0xff]
    %v667 = vld [vmem:[%s6 + $0x45c] sm:$0xf]
    %v668 = vld [vmem:[%s6 + $0x460] sm:$0xff]
    %v669 = vld [vmem:[%s6 + $0x468] sm:$0xff]
    %v670 = vld [vmem:[%s6 + $0x470] sm:$0xff]
    %v671 = vld [vmem:[%s6 + $0x478] sm:$0xf]
    %v672 = vld [vmem:[%s6 + $0x47c] sm:$0xff]
    %v673 = vld [vmem:[%s6 + $0x484] sm:$0xff]
    %v674 = vld [vmem:[%s6 + $0x48c] sm:$0xff]
    %v675 = vld [vmem:[%s6 + $0x494] sm:$0xf]
    %v676 = vld [vmem:[%s6 + $0x498] sm:$0xff]
    %v677 = vld [vmem:[%s6 + $0x4a0] sm:$0xff]
    %v678 = vld [vmem:[%s6 + $0x4a8] sm:$0xff]
    %v679 = vld [vmem:[%s6 + $0x4b0] sm:$0xf]
    %v680 = vld [vmem:[%s6 + $0x4b4] sm:$0xff]
    %v681 = vld [vmem:[%s6 + $0x4bc] sm:$0xff]
    %v682 = vld [vmem:[%s6 + $0x4c4] sm:$0xff]
    %v683 = vld [vmem:[%s6 + $0x4cc] sm:$0xf]
    %v684 = vld [vmem:[%s6 + $0x4d0] sm:$0xff]
    %v685 = vld [vmem:[%s6 + $0x4d8] sm:$0xff]
    %v686 = vld [vmem:[%s6 + $0x4e0] sm:$0xff]
    %v687 = vld [vmem:[%s6 + $0x4e8] sm:$0xf]
    %v688 = vld [vmem:[%s6 + $0x4ec] sm:$0xff]
    %v689 = vld [vmem:[%s6 + $0x4f4] sm:$0xff]
    %v690 = vld [vmem:[%s6 + $0x4fc] sm:$0xff]
    %v691 = vld [vmem:[%s6 + $0x504] sm:$0xf]
    %v692 = vld [vmem:[%s6 + $0x508] sm:$0xff]
    %v693 = vld [vmem:[%s6 + $0x510] sm:$0xff]
    %v694 = vld [vmem:[%s6 + $0x518] sm:$0xff]
    %v695 = vld [vmem:[%s6 + $0x520] sm:$0xf]
    %v696 = vld [vmem:[%s6 + $0x524] sm:$0xff]
    %v697 = vld [vmem:[%s6 + $0x52c] sm:$0xff]
    %v698 = vld [vmem:[%s6 + $0x534] sm:$0xff]
    %v699 = vld [vmem:[%s6 + $0x53c] sm:$0xf]
    %v700 = vld [vmem:[%s6 + $0x540] sm:$0xff]
    %v701 = vld [vmem:[%s6 + $0x548] sm:$0xff]
    %v702 = vld [vmem:[%s6 + $0x550] sm:$0xff]
    %v703 = vld [vmem:[%s6 + $0x558] sm:$0xf]
    %v704 = vld [vmem:[%s6 + $0x55c] sm:$0xff]
    %v705 = vld [vmem:[%s6 + $0x564] sm:$0xff]
    %v706 = vld [vmem:[%s6 + $0x56c] sm:$0xff]
    %v707 = vld [vmem:[%s6 + $0x574] sm:$0xf]
    %v708 = vld [vmem:[%s6 + $0x578] sm:$0xff]
    %v709 = vld [vmem:[%s6 + $0x580] sm:$0xff]
    %v710 = vld [vmem:[%s6 + $0x588] sm:$0xff]
    %v711 = vld [vmem:[%s6 + $0x590] sm:$0xf]
    %v712 = vld [vmem:[%s6 + $0x594] sm:$0xff]
    %v713 = vld [vmem:[%s6 + $0x59c] sm:$0xff]
    %v714 = vld [vmem:[%s6 + $0x5a4] sm:$0xff]
    %v715 = vld [vmem:[%s6 + $0x5ac] sm:$0xf]
    %v716 = vld [vmem:[%s6 + $0x5b0] sm:$0xff]
    %v717 = vld [vmem:[%s6 + $0x5b8] sm:$0xff]
    %v718 = vld [vmem:[%s6 + $0x5c0] sm:$0xff]
    %v719 = vld [vmem:[%s6 + $0x5c8] sm:$0xf]
    %v720 = vld [vmem:[%s6 + $0x5cc] sm:$0xff]
    %v721 = vld [vmem:[%s6 + $0x5d4] sm:$0xff]
    %v722 = vld [vmem:[%s6 + $0x5dc] sm:$0xff]
    %v723 = vld [vmem:[%s6 + $0x5e4] sm:$0xf]
    %v724 = vld [vmem:[%s6 + $0x5e8] sm:$0xff]
    %v725 = vld [vmem:[%s6 + $0x5f0] sm:$0xff]
    %v726 = vld [vmem:[%s6 + $0x5f8] sm:$0xff]
    %v727 = vld [vmem:[%s6 + $0x600] sm:$0xf]
    %v728 = vld [vmem:[%s6 + $0x604] sm:$0xff]
    %v729 = vld [vmem:[%s6 + $0x60c] sm:$0xff]
    %v730 = vld [vmem:[%s6 + $0x614] sm:$0xff]
    %v731 = vld [vmem:[%s6 + $0x61c] sm:$0xf]
    %v732 = vld [vmem:[%s6 + $0x620] sm:$0xff]
    %v733 = vld [vmem:[%s6 + $0x628] sm:$0xff]
    %v734 = vld [vmem:[%s6 + $0x630] sm:$0xff]
    %v735 = vld [vmem:[%s6 + $0x638] sm:$0xf]
    %v736 = vld [vmem:[%s6 + $0x63c] sm:$0xff]
    %v737 = vld [vmem:[%s6 + $0x644] sm:$0xff]
    %v738 = vld [vmem:[%s6 + $0x64c] sm:$0xff]
    %v739 = vld [vmem:[%s6 + $0x654] sm:$0xf]
    %v740 = vld [vmem:[%s6 + $0x658] sm:$0xff]
    %v741 = vld [vmem:[%s6 + $0x660] sm:$0xff]
    %v742 = vld [vmem:[%s6 + $0x668] sm:$0xff]
    %v743 = vld [vmem:[%s6 + $0x670] sm:$0xf]
    %v744 = vld [vmem:[%s6 + $0x674] sm:$0xff]
    %v745 = vld [vmem:[%s6 + $0x67c] sm:$0xff]
    %v746 = vld [vmem:[%s6 + $0x684] sm:$0xff]
    %v747 = vld [vmem:[%s6 + $0x68c] sm:$0xf]
    %v748 = vld [vmem:[%s6 + $0x690] sm:$0xff]
    %v749 = vld [vmem:[%s6 + $0x698] sm:$0xff]
    %v750 = vld [vmem:[%s6 + $0x6a0] sm:$0xff]
    %v751 = vld [vmem:[%s6 + $0x6a8] sm:$0xf]
    %v752 = vld [vmem:[%s6 + $0x6ac] sm:$0xff]
    %v753 = vld [vmem:[%s6 + $0x6b4] sm:$0xff]
    %v754 = vld [vmem:[%s6 + $0x6bc] sm:$0xff]
    %v755 = vld [vmem:[%s6 + $0x6c4] sm:$0xf]
    %v756 = vld [vmem:[%s6 + $0x6c8] sm:$0xff]
    %v757 = vld [vmem:[%s6 + $0x6d0] sm:$0xff]
    %v758 = vld [vmem:[%s6 + $0x6d8] sm:$0xff]
    %v759 = vld [vmem:[%s6 + $0x6e0] sm:$0xf]
    %v760 = vld [vmem:[%s6 + $0x6e4] sm:$0xff]
    %v761 = vld [vmem:[%s6 + $0x6ec] sm:$0xff]
    %v762 = vld [vmem:[%s6 + $0x6f4] sm:$0xff]
    %v763 = vld [vmem:[%s6 + $0x6fc] sm:$0xf]
    %v764 = vld [vmem:[%s7] sm:$0x7f]
    %v766 = vlaneseq
    %v767 = vshrl.u32 %v766, 7
    %v768 = vsub.s32 0, %v767
    %v769 = vrot.slane %v764, %v768
    %v770 = vlaneseq
    %v771 = vshrl.u32 %v770, 7
    %v772 = vsub.s32 1, %v771
    %v773 = vrot.slane %v764, %v772
    %v774 = vlaneseq
    %v775 = vshrl.u32 %v774, 7
    %v776 = vsub.s32 2, %v775
    %v777 = vrot.slane %v764, %v776
    %v778 = vlaneseq
    %v779 = vshrl.u32 %v778, 7
    %v780 = vsub.s32 3, %v779
    %v781 = vrot.slane %v764, %v780
    %v782 = vlaneseq
    %v783 = vshrl.u32 %v782, 7
    %v784 = vsub.s32 4, %v783
    %v785 = vrot.slane %v764, %v784
    %v786 = vlaneseq
    %v787 = vshrl.u32 %v786, 7
    %v788 = vsub.s32 5, %v787
    %v789 = vrot.slane %v764, %v788
    %v790 = vlaneseq
    %v791 = vshrl.u32 %v790, 7
    %v792 = vsub.s32 6, %v791
    %v793 = vrot.slane %v764, %v792
    %v1057 = vunpack.c.l.b16 %v508
    %v1058 = vunpack.c.h.b16 %v508
    %v1059 = vunpack.c.l.b16 %v509
    %v1060 = vunpack.c.h.b16 %v509
    %v1061 = vunpack.c.l.b16 %v510
    %v1062 = vunpack.c.h.b16 %v510
    %v1063 = vunpack.c.l.b16 %v511
    %v1064 = vunpack.c.l.b16 %v512
    %v1065 = vunpack.c.h.b16 %v512
    %v1066 = vunpack.c.l.b16 %v513
    %v1067 = vunpack.c.h.b16 %v513
    %v1068 = vunpack.c.l.b16 %v514
    %v1069 = vunpack.c.h.b16 %v514
    %v1070 = vunpack.c.l.b16 %v515
    %v1071 = vunpack.c.l.b16 %v516
    %v1072 = vunpack.c.h.b16 %v516
    %v1073 = vunpack.c.l.b16 %v517
    %v1074 = vunpack.c.h.b16 %v517
    %v1075 = vunpack.c.l.b16 %v518
    %v1076 = vunpack.c.h.b16 %v518
    %v1077 = vunpack.c.l.b16 %v519
    %v1078 = vunpack.c.l.b16 %v520
    %v1079 = vunpack.c.h.b16 %v520
    %v1080 = vunpack.c.l.b16 %v521
    %v1081 = vunpack.c.h.b16 %v521
    %v1082 = vunpack.c.l.b16 %v522
    %v1083 = vunpack.c.h.b16 %v522
    %v1084 = vunpack.c.l.b16 %v523
    %v1085 = vunpack.c.l.b16 %v524
    %v1086 = vunpack.c.h.b16 %v524
    %v1087 = vunpack.c.l.b16 %v525
    %v1088 = vunpack.c.h.b16 %v525
    %v1089 = vunpack.c.l.b16 %v526
    %v1090 = vunpack.c.h.b16 %v526
    %v1091 = vunpack.c.l.b16 %v527
    %v1092 = vunpack.c.l.b16 %v528
    %v1093 = vunpack.c.h.b16 %v528
    %v1094 = vunpack.c.l.b16 %v529
    %v1095 = vunpack.c.h.b16 %v529
    %v1096 = vunpack.c.l.b16 %v530
    %v1097 = vunpack.c.h.b16 %v530
    %v1098 = vunpack.c.l.b16 %v531
    %v1099 = vunpack.c.l.b16 %v532
    %v1100 = vunpack.c.h.b16 %v532
    %v1101 = vunpack.c.l.b16 %v533
    %v1102 = vunpack.c.h.b16 %v533
    %v1103 = vunpack.c.l.b16 %v534
    %v1104 = vunpack.c.h.b16 %v534
    %v1105 = vunpack.c.l.b16 %v535
    %v1106 = vunpack.c.l.b16 %v536
    %v1107 = vunpack.c.h.b16 %v536
    %v1108 = vunpack.c.l.b16 %v537
    %v1109 = vunpack.c.h.b16 %v537
    %v1110 = vunpack.c.l.b16 %v538
    %v1111 = vunpack.c.h.b16 %v538
    %v1112 = vunpack.c.l.b16 %v539
    %v1113 = vunpack.c.l.b16 %v540
    %v1114 = vunpack.c.h.b16 %v540
    %v1115 = vunpack.c.l.b16 %v541
    %v1116 = vunpack.c.h.b16 %v541
    %v1117 = vunpack.c.l.b16 %v542
    %v1118 = vunpack.c.h.b16 %v542
    %v1119 = vunpack.c.l.b16 %v543
    %v1120 = vunpack.c.l.b16 %v544
    %v1121 = vunpack.c.h.b16 %v544
    %v1122 = vunpack.c.l.b16 %v545
    %v1123 = vunpack.c.h.b16 %v545
    %v1124 = vunpack.c.l.b16 %v546
    %v1125 = vunpack.c.h.b16 %v546
    %v1126 = vunpack.c.l.b16 %v547
    %v1127 = vunpack.c.l.b16 %v548
    %v1128 = vunpack.c.h.b16 %v548
    %v1129 = vunpack.c.l.b16 %v549
    %v1130 = vunpack.c.h.b16 %v549
    %v1131 = vunpack.c.l.b16 %v550
    %v1132 = vunpack.c.h.b16 %v550
    %v1133 = vunpack.c.l.b16 %v551
    %v1134 = vunpack.c.l.b16 %v552
    %v1135 = vunpack.c.h.b16 %v552
    %v1136 = vunpack.c.l.b16 %v553
    %v1137 = vunpack.c.h.b16 %v553
    %v1138 = vunpack.c.l.b16 %v554
    %v1139 = vunpack.c.h.b16 %v554
    %v1140 = vunpack.c.l.b16 %v555
    %v1141 = vunpack.c.l.b16 %v556
    %v1142 = vunpack.c.h.b16 %v556
    %v1143 = vunpack.c.l.b16 %v557
    %v1144 = vunpack.c.h.b16 %v557
    %v1145 = vunpack.c.l.b16 %v558
    %v1146 = vunpack.c.h.b16 %v558
    %v1147 = vunpack.c.l.b16 %v559
    %v1148 = vunpack.c.l.b16 %v560
    %v1149 = vunpack.c.h.b16 %v560
    %v1150 = vunpack.c.l.b16 %v561
    %v1151 = vunpack.c.h.b16 %v561
    %v1152 = vunpack.c.l.b16 %v562
    %v1153 = vunpack.c.h.b16 %v562
    %v1154 = vunpack.c.l.b16 %v563
    %v1155 = vunpack.c.l.b16 %v564
    %v1156 = vunpack.c.h.b16 %v564
    %v1157 = vunpack.c.l.b16 %v565
    %v1158 = vunpack.c.h.b16 %v565
    %v1159 = vunpack.c.l.b16 %v566
    %v1160 = vunpack.c.h.b16 %v566
    %v1161 = vunpack.c.l.b16 %v567
    %v1162 = vunpack.c.l.b16 %v568
    %v1163 = vunpack.c.h.b16 %v568
    %v1164 = vunpack.c.l.b16 %v569
    %v1165 = vunpack.c.h.b16 %v569
    %v1166 = vunpack.c.l.b16 %v570
    %v1167 = vunpack.c.h.b16 %v570
    %v1168 = vunpack.c.l.b16 %v571
    %v1169 = vunpack.c.l.b16 %v572
    %v1170 = vunpack.c.h.b16 %v572
    %v1171 = vunpack.c.l.b16 %v573
    %v1172 = vunpack.c.h.b16 %v573
    %v1173 = vunpack.c.l.b16 %v574
    %v1174 = vunpack.c.h.b16 %v574
    %v1175 = vunpack.c.l.b16 %v575
    %v1176 = vunpack.c.l.b16 %v576
    %v1177 = vunpack.c.h.b16 %v576
    %v1178 = vunpack.c.l.b16 %v577
    %v1179 = vunpack.c.h.b16 %v577
    %v1180 = vunpack.c.l.b16 %v578
    %v1181 = vunpack.c.h.b16 %v578
    %v1182 = vunpack.c.l.b16 %v579
    %v1183 = vunpack.c.l.b16 %v580
    %v1184 = vunpack.c.h.b16 %v580
    %v1185 = vunpack.c.l.b16 %v581
    %v1186 = vunpack.c.h.b16 %v581
    %v1187 = vunpack.c.l.b16 %v582
    %v1188 = vunpack.c.h.b16 %v582
    %v1189 = vunpack.c.l.b16 %v583
    %v1190 = vunpack.c.l.b16 %v584
    %v1191 = vunpack.c.h.b16 %v584
    %v1192 = vunpack.c.l.b16 %v585
    %v1193 = vunpack.c.h.b16 %v585
    %v1194 = vunpack.c.l.b16 %v586
    %v1195 = vunpack.c.h.b16 %v586
    %v1196 = vunpack.c.l.b16 %v587
    %v1197 = vunpack.c.l.b16 %v588
    %v1198 = vunpack.c.h.b16 %v588
    %v1199 = vunpack.c.l.b16 %v589
    %v1200 = vunpack.c.h.b16 %v589
    %v1201 = vunpack.c.l.b16 %v590
    %v1202 = vunpack.c.h.b16 %v590
    %v1203 = vunpack.c.l.b16 %v591
    %v1204 = vunpack.c.l.b16 %v592
    %v1205 = vunpack.c.h.b16 %v592
    %v1206 = vunpack.c.l.b16 %v593
    %v1207 = vunpack.c.h.b16 %v593
    %v1208 = vunpack.c.l.b16 %v594
    %v1209 = vunpack.c.h.b16 %v594
    %v1210 = vunpack.c.l.b16 %v595
    %v1211 = vunpack.c.l.b16 %v596
    %v1212 = vunpack.c.h.b16 %v596
    %v1213 = vunpack.c.l.b16 %v597
    %v1214 = vunpack.c.h.b16 %v597
    %v1215 = vunpack.c.l.b16 %v598
    %v1216 = vunpack.c.h.b16 %v598
    %v1217 = vunpack.c.l.b16 %v599
    %v1218 = vunpack.c.l.b16 %v600
    %v1219 = vunpack.c.h.b16 %v600
    %v1220 = vunpack.c.l.b16 %v601
    %v1221 = vunpack.c.h.b16 %v601
    %v1222 = vunpack.c.l.b16 %v602
    %v1223 = vunpack.c.h.b16 %v602
    %v1224 = vunpack.c.l.b16 %v603
    %v1225 = vunpack.c.l.b16 %v604
    %v1226 = vunpack.c.h.b16 %v604
    %v1227 = vunpack.c.l.b16 %v605
    %v1228 = vunpack.c.h.b16 %v605
    %v1229 = vunpack.c.l.b16 %v606
    %v1230 = vunpack.c.h.b16 %v606
    %v1231 = vunpack.c.l.b16 %v607
    %v1232 = vunpack.c.l.b16 %v608
    %v1233 = vunpack.c.h.b16 %v608
    %v1234 = vunpack.c.l.b16 %v609
    %v1235 = vunpack.c.h.b16 %v609
    %v1236 = vunpack.c.l.b16 %v610
    %v1237 = vunpack.c.h.b16 %v610
    %v1238 = vunpack.c.l.b16 %v611
    %v1239 = vunpack.c.l.b16 %v612
    %v1240 = vunpack.c.h.b16 %v612
    %v1241 = vunpack.c.l.b16 %v613
    %v1242 = vunpack.c.h.b16 %v613
    %v1243 = vunpack.c.l.b16 %v614
    %v1244 = vunpack.c.h.b16 %v614
    %v1245 = vunpack.c.l.b16 %v615
    %v1246 = vunpack.c.l.b16 %v616
    %v1247 = vunpack.c.h.b16 %v616
    %v1248 = vunpack.c.l.b16 %v617
    %v1249 = vunpack.c.h.b16 %v617
    %v1250 = vunpack.c.l.b16 %v618
    %v1251 = vunpack.c.h.b16 %v618
    %v1252 = vunpack.c.l.b16 %v619
    %v1253 = vunpack.c.l.b16 %v620
    %v1254 = vunpack.c.h.b16 %v620
    %v1255 = vunpack.c.l.b16 %v621
    %v1256 = vunpack.c.h.b16 %v621
    %v1257 = vunpack.c.l.b16 %v622
    %v1258 = vunpack.c.h.b16 %v622
    %v1259 = vunpack.c.l.b16 %v623
    %v1260 = vunpack.c.l.b16 %v624
    %v1261 = vunpack.c.h.b16 %v624
    %v1262 = vunpack.c.l.b16 %v625
    %v1263 = vunpack.c.h.b16 %v625
    %v1264 = vunpack.c.l.b16 %v626
    %v1265 = vunpack.c.h.b16 %v626
    %v1266 = vunpack.c.l.b16 %v627
    %v1267 = vunpack.c.l.b16 %v628
    %v1268 = vunpack.c.h.b16 %v628
    %v1269 = vunpack.c.l.b16 %v629
    %v1270 = vunpack.c.h.b16 %v629
    %v1271 = vunpack.c.l.b16 %v630
    %v1272 = vunpack.c.h.b16 %v630
    %v1273 = vunpack.c.l.b16 %v631
    %v1274 = vunpack.c.l.b16 %v632
    %v1275 = vunpack.c.h.b16 %v632
    %v1276 = vunpack.c.l.b16 %v633
    %v1277 = vunpack.c.h.b16 %v633
    %v1278 = vunpack.c.l.b16 %v634
    %v1279 = vunpack.c.h.b16 %v634
    %v1280 = vunpack.c.l.b16 %v635
    %v1281 = vunpack.c.l.b16 %v636
    %v1282 = vunpack.c.h.b16 %v636
    %v1283 = vunpack.c.l.b16 %v637
    %v1284 = vunpack.c.h.b16 %v637
    %v1285 = vunpack.c.l.b16 %v638
    %v1286 = vunpack.c.h.b16 %v638
    %v1287 = vunpack.c.l.b16 %v639
    %v1288 = vunpack.c.l.b16 %v640
    %v1289 = vunpack.c.h.b16 %v640
    %v1290 = vunpack.c.l.b16 %v641
    %v1291 = vunpack.c.h.b16 %v641
    %v1292 = vunpack.c.l.b16 %v642
    %v1293 = vunpack.c.h.b16 %v642
    %v1294 = vunpack.c.l.b16 %v643
    %v1295 = vunpack.c.l.b16 %v644
    %v1296 = vunpack.c.h.b16 %v644
    %v1297 = vunpack.c.l.b16 %v645
    %v1298 = vunpack.c.h.b16 %v645
    %v1299 = vunpack.c.l.b16 %v646
    %v1300 = vunpack.c.h.b16 %v646
    %v1301 = vunpack.c.l.b16 %v647
    %v1302 = vunpack.c.l.b16 %v648
    %v1303 = vunpack.c.h.b16 %v648
    %v1304 = vunpack.c.l.b16 %v649
    %v1305 = vunpack.c.h.b16 %v649
    %v1306 = vunpack.c.l.b16 %v650
    %v1307 = vunpack.c.h.b16 %v650
    %v1308 = vunpack.c.l.b16 %v651
    %v1309 = vunpack.c.l.b16 %v652
    %v1310 = vunpack.c.h.b16 %v652
    %v1311 = vunpack.c.l.b16 %v653
    %v1312 = vunpack.c.h.b16 %v653
    %v1313 = vunpack.c.l.b16 %v654
    %v1314 = vunpack.c.h.b16 %v654
    %v1315 = vunpack.c.l.b16 %v655
    %v1316 = vunpack.c.l.b16 %v656
    %v1317 = vunpack.c.h.b16 %v656
    %v1318 = vunpack.c.l.b16 %v657
    %v1319 = vunpack.c.h.b16 %v657
    %v1320 = vunpack.c.l.b16 %v658
    %v1321 = vunpack.c.h.b16 %v658
    %v1322 = vunpack.c.l.b16 %v659
    %v1323 = vunpack.c.l.b16 %v660
    %v1324 = vunpack.c.h.b16 %v660
    %v1325 = vunpack.c.l.b16 %v661
    %v1326 = vunpack.c.h.b16 %v661
    %v1327 = vunpack.c.l.b16 %v662
    %v1328 = vunpack.c.h.b16 %v662
    %v1329 = vunpack.c.l.b16 %v663
    %v1330 = vunpack.c.l.b16 %v664
    %v1331 = vunpack.c.h.b16 %v664
    %v1332 = vunpack.c.l.b16 %v665
    %v1333 = vunpack.c.h.b16 %v665
    %v1334 = vunpack.c.l.b16 %v666
    %v1335 = vunpack.c.h.b16 %v666
    %v1336 = vunpack.c.l.b16 %v667
    %v1337 = vunpack.c.l.b16 %v668
    %v1338 = vunpack.c.h.b16 %v668
    %v1339 = vunpack.c.l.b16 %v669
    %v1340 = vunpack.c.h.b16 %v669
    %v1341 = vunpack.c.l.b16 %v670
    %v1342 = vunpack.c.h.b16 %v670
    %v1343 = vunpack.c.l.b16 %v671
    %v1344 = vunpack.c.l.b16 %v672
    %v1345 = vunpack.c.h.b16 %v672
    %v1346 = vunpack.c.l.b16 %v673
    %v1347 = vunpack.c.h.b16 %v673
    %v1348 = vunpack.c.l.b16 %v674
    %v1349 = vunpack.c.h.b16 %v674
    %v1350 = vunpack.c.l.b16 %v675
    %v1351 = vunpack.c.l.b16 %v676
    %v1352 = vunpack.c.h.b16 %v676
    %v1353 = vunpack.c.l.b16 %v677
    %v1354 = vunpack.c.h.b16 %v677
    %v1355 = vunpack.c.l.b16 %v678
    %v1356 = vunpack.c.h.b16 %v678
    %v1357 = vunpack.c.l.b16 %v679
    %v1358 = vunpack.c.l.b16 %v680
    %v1359 = vunpack.c.h.b16 %v680
    %v1360 = vunpack.c.l.b16 %v681
    %v1361 = vunpack.c.h.b16 %v681
    %v1362 = vunpack.c.l.b16 %v682
    %v1363 = vunpack.c.h.b16 %v682
    %v1364 = vunpack.c.l.b16 %v683
    %v1365 = vunpack.c.l.b16 %v684
    %v1366 = vunpack.c.h.b16 %v684
    %v1367 = vunpack.c.l.b16 %v685
    %v1368 = vunpack.c.h.b16 %v685
    %v1369 = vunpack.c.l.b16 %v686
    %v1370 = vunpack.c.h.b16 %v686
    %v1371 = vunpack.c.l.b16 %v687
    %v1372 = vunpack.c.l.b16 %v688
    %v1373 = vunpack.c.h.b16 %v688
    %v1374 = vunpack.c.l.b16 %v689
    %v1375 = vunpack.c.h.b16 %v689
    %v1376 = vunpack.c.l.b16 %v690
    %v1377 = vunpack.c.h.b16 %v690
    %v1378 = vunpack.c.l.b16 %v691
    %v1379 = vunpack.c.l.b16 %v692
    %v1380 = vunpack.c.h.b16 %v692
    %v1381 = vunpack.c.l.b16 %v693
    %v1382 = vunpack.c.h.b16 %v693
    %v1383 = vunpack.c.l.b16 %v694
    %v1384 = vunpack.c.h.b16 %v694
    %v1385 = vunpack.c.l.b16 %v695
    %v1386 = vunpack.c.l.b16 %v696
    %v1387 = vunpack.c.h.b16 %v696
    %v1388 = vunpack.c.l.b16 %v697
    %v1389 = vunpack.c.h.b16 %v697
    %v1390 = vunpack.c.l.b16 %v698
    %v1391 = vunpack.c.h.b16 %v698
    %v1392 = vunpack.c.l.b16 %v699
    %v1393 = vunpack.c.l.b16 %v700
    %v1394 = vunpack.c.h.b16 %v700
    %v1395 = vunpack.c.l.b16 %v701
    %v1396 = vunpack.c.h.b16 %v701
    %v1397 = vunpack.c.l.b16 %v702
    %v1398 = vunpack.c.h.b16 %v702
    %v1399 = vunpack.c.l.b16 %v703
    %v1400 = vunpack.c.l.b16 %v704
    %v1401 = vunpack.c.h.b16 %v704
    %v1402 = vunpack.c.l.b16 %v705
    %v1403 = vunpack.c.h.b16 %v705
    %v1404 = vunpack.c.l.b16 %v706
    %v1405 = vunpack.c.h.b16 %v706
    %v1406 = vunpack.c.l.b16 %v707
    %v1407 = vunpack.c.l.b16 %v708
    %v1408 = vunpack.c.h.b16 %v708
    %v1409 = vunpack.c.l.b16 %v709
    %v1410 = vunpack.c.h.b16 %v709
    %v1411 = vunpack.c.l.b16 %v710
    %v1412 = vunpack.c.h.b16 %v710
    %v1413 = vunpack.c.l.b16 %v711
    %v1414 = vunpack.c.l.b16 %v712
    %v1415 = vunpack.c.h.b16 %v712
    %v1416 = vunpack.c.l.b16 %v713
    %v1417 = vunpack.c.h.b16 %v713
    %v1418 = vunpack.c.l.b16 %v714
    %v1419 = vunpack.c.h.b16 %v714
    %v1420 = vunpack.c.l.b16 %v715
    %v1421 = vunpack.c.l.b16 %v716
    %v1422 = vunpack.c.h.b16 %v716
    %v1423 = vunpack.c.l.b16 %v717
    %v1424 = vunpack.c.h.b16 %v717
    %v1425 = vunpack.c.l.b16 %v718
    %v1426 = vunpack.c.h.b16 %v718
    %v1427 = vunpack.c.l.b16 %v719
    %v1428 = vunpack.c.l.b16 %v720
    %v1429 = vunpack.c.h.b16 %v720
    %v1430 = vunpack.c.l.b16 %v721
    %v1431 = vunpack.c.h.b16 %v721
    %v1432 = vunpack.c.l.b16 %v722
    %v1433 = vunpack.c.h.b16 %v722
    %v1434 = vunpack.c.l.b16 %v723
    %v1435 = vunpack.c.l.b16 %v724
    %v1436 = vunpack.c.h.b16 %v724
    %v1437 = vunpack.c.l.b16 %v725
    %v1438 = vunpack.c.h.b16 %v725
    %v1439 = vunpack.c.l.b16 %v726
    %v1440 = vunpack.c.h.b16 %v726
    %v1441 = vunpack.c.l.b16 %v727
    %v1442 = vunpack.c.l.b16 %v728
    %v1443 = vunpack.c.h.b16 %v728
    %v1444 = vunpack.c.l.b16 %v729
    %v1445 = vunpack.c.h.b16 %v729
    %v1446 = vunpack.c.l.b16 %v730
    %v1447 = vunpack.c.h.b16 %v730
    %v1448 = vunpack.c.l.b16 %v731
    %v1449 = vunpack.c.l.b16 %v732
    %v1450 = vunpack.c.h.b16 %v732
    %v1451 = vunpack.c.l.b16 %v733
    %v1452 = vunpack.c.h.b16 %v733
    %v1453 = vunpack.c.l.b16 %v734
    %v1454 = vunpack.c.h.b16 %v734
    %v1455 = vunpack.c.l.b16 %v735
    %v1456 = vunpack.c.l.b16 %v736
    %v1457 = vunpack.c.h.b16 %v736
    %v1458 = vunpack.c.l.b16 %v737
    %v1459 = vunpack.c.h.b16 %v737
    %v1460 = vunpack.c.l.b16 %v738
    %v1461 = vunpack.c.h.b16 %v738
    %v1462 = vunpack.c.l.b16 %v739
    %v1463 = vunpack.c.l.b16 %v740
    %v1464 = vunpack.c.h.b16 %v740
    %v1465 = vunpack.c.l.b16 %v741
    %v1466 = vunpack.c.h.b16 %v741
    %v1467 = vunpack.c.l.b16 %v742
    %v1468 = vunpack.c.h.b16 %v742
    %v1469 = vunpack.c.l.b16 %v743
    %v1470 = vunpack.c.l.b16 %v744
    %v1471 = vunpack.c.h.b16 %v744
    %v1472 = vunpack.c.l.b16 %v745
    %v1473 = vunpack.c.h.b16 %v745
    %v1474 = vunpack.c.l.b16 %v746
    %v1475 = vunpack.c.h.b16 %v746
    %v1476 = vunpack.c.l.b16 %v747
    %v1477 = vunpack.c.l.b16 %v748
    %v1478 = vunpack.c.h.b16 %v748
    %v1479 = vunpack.c.l.b16 %v749
    %v1480 = vunpack.c.h.b16 %v749
    %v1481 = vunpack.c.l.b16 %v750
    %v1482 = vunpack.c.h.b16 %v750
    %v1483 = vunpack.c.l.b16 %v751
    %v1484 = vunpack.c.l.b16 %v752
    %v1485 = vunpack.c.h.b16 %v752
    %v1486 = vunpack.c.l.b16 %v753
    %v1487 = vunpack.c.h.b16 %v753
    %v1488 = vunpack.c.l.b16 %v754
    %v1489 = vunpack.c.h.b16 %v754
    %v1490 = vunpack.c.l.b16 %v755
    %v1491 = vunpack.c.l.b16 %v756
    %v1492 = vunpack.c.h.b16 %v756
    %v1493 = vunpack.c.l.b16 %v757
    %v1494 = vunpack.c.h.b16 %v757
    %v1495 = vunpack.c.l.b16 %v758
    %v1496 = vunpack.c.h.b16 %v758
    %v1497 = vunpack.c.l.b16 %v759
    %v1498 = vunpack.c.l.b16 %v760
    %v1499 = vunpack.c.h.b16 %v760
    %v1500 = vunpack.c.l.b16 %v761
    %v1501 = vunpack.c.h.b16 %v761
    %v1502 = vunpack.c.l.b16 %v762
    %v1503 = vunpack.c.h.b16 %v762
    %v1504 = vunpack.c.l.b16 %v763
    %v1505 = vpack.c.b16 %v1064, %v1057
    %v1506 = vpack.c.b16 %v1065, %v1058
    %v1507 = vpack.c.b16 %v1066, %v1059
    %v1508 = vpack.c.b16 %v1067, %v1060
    %v1509 = vpack.c.b16 %v1068, %v1061
    %v1510 = vpack.c.b16 %v1069, %v1062
    %v1511 = vpack.c.b16 %v1070, %v1063
    %v1512 = vpack.c.b16 %v1078, %v1071
    %v1513 = vpack.c.b16 %v1079, %v1072
    %v1514 = vpack.c.b16 %v1080, %v1073
    %v1515 = vpack.c.b16 %v1081, %v1074
    %v1516 = vpack.c.b16 %v1082, %v1075
    %v1517 = vpack.c.b16 %v1083, %v1076
    %v1518 = vpack.c.b16 %v1084, %v1077
    %v1519 = vpack.c.b16 %v1092, %v1085
    %v1520 = vpack.c.b16 %v1093, %v1086
    %v1521 = vpack.c.b16 %v1094, %v1087
    %v1522 = vpack.c.b16 %v1095, %v1088
    %v1523 = vpack.c.b16 %v1096, %v1089
    %v1524 = vpack.c.b16 %v1097, %v1090
    %v1525 = vpack.c.b16 %v1098, %v1091
    %v1526 = vpack.c.b16 %v1106, %v1099
    %v1527 = vpack.c.b16 %v1107, %v1100
    %v1528 = vpack.c.b16 %v1108, %v1101
    %v1529 = vpack.c.b16 %v1109, %v1102
    %v1530 = vpack.c.b16 %v1110, %v1103
    %v1531 = vpack.c.b16 %v1111, %v1104
    %v1532 = vpack.c.b16 %v1112, %v1105
    %v1533 = vpack.c.b16 %v1120, %v1113
    %v1534 = vpack.c.b16 %v1121, %v1114
    %v1535 = vpack.c.b16 %v1122, %v1115
    %v1536 = vpack.c.b16 %v1123, %v1116
    %v1537 = vpack.c.b16 %v1124, %v1117
    %v1538 = vpack.c.b16 %v1125, %v1118
    %v1539 = vpack.c.b16 %v1126, %v1119
    %v1540 = vpack.c.b16 %v1134, %v1127
    %v1541 = vpack.c.b16 %v1135, %v1128
    %v1542 = vpack.c.b16 %v1136, %v1129
    %v1543 = vpack.c.b16 %v1137, %v1130
    %v1544 = vpack.c.b16 %v1138, %v1131
    %v1545 = vpack.c.b16 %v1139, %v1132
    %v1546 = vpack.c.b16 %v1140, %v1133
    %v1547 = vpack.c.b16 %v1148, %v1141
    %v1548 = vpack.c.b16 %v1149, %v1142
    %v1549 = vpack.c.b16 %v1150, %v1143
    %v1550 = vpack.c.b16 %v1151, %v1144
    %v1551 = vpack.c.b16 %v1152, %v1145
    %v1552 = vpack.c.b16 %v1153, %v1146
    %v1553 = vpack.c.b16 %v1154, %v1147
    %v1554 = vpack.c.b16 %v1162, %v1155
    %v1555 = vpack.c.b16 %v1163, %v1156
    %v1556 = vpack.c.b16 %v1164, %v1157
    %v1557 = vpack.c.b16 %v1165, %v1158
    %v1558 = vpack.c.b16 %v1166, %v1159
    %v1559 = vpack.c.b16 %v1167, %v1160
    %v1560 = vpack.c.b16 %v1168, %v1161
    %v1561 = vpack.c.b16 %v1176, %v1169
    %v1562 = vpack.c.b16 %v1177, %v1170
    %v1563 = vpack.c.b16 %v1178, %v1171
    %v1564 = vpack.c.b16 %v1179, %v1172
    %v1565 = vpack.c.b16 %v1180, %v1173
    %v1566 = vpack.c.b16 %v1181, %v1174
    %v1567 = vpack.c.b16 %v1182, %v1175
    %v1568 = vpack.c.b16 %v1190, %v1183
    %v1569 = vpack.c.b16 %v1191, %v1184
    %v1570 = vpack.c.b16 %v1192, %v1185
    %v1571 = vpack.c.b16 %v1193, %v1186
    %v1572 = vpack.c.b16 %v1194, %v1187
    %v1573 = vpack.c.b16 %v1195, %v1188
    %v1574 = vpack.c.b16 %v1196, %v1189
    %v1575 = vpack.c.b16 %v1204, %v1197
    %v1576 = vpack.c.b16 %v1205, %v1198
    %v1577 = vpack.c.b16 %v1206, %v1199
    %v1578 = vpack.c.b16 %v1207, %v1200
    %v1579 = vpack.c.b16 %v1208, %v1201
    %v1580 = vpack.c.b16 %v1209, %v1202
    %v1581 = vpack.c.b16 %v1210, %v1203
    %v1582 = vpack.c.b16 %v1218, %v1211
    %v1583 = vpack.c.b16 %v1219, %v1212
    %v1584 = vpack.c.b16 %v1220, %v1213
    %v1585 = vpack.c.b16 %v1221, %v1214
    %v1586 = vpack.c.b16 %v1222, %v1215
    %v1587 = vpack.c.b16 %v1223, %v1216
    %v1588 = vpack.c.b16 %v1224, %v1217
    %v1589 = vpack.c.b16 %v1232, %v1225
    %v1590 = vpack.c.b16 %v1233, %v1226
    %v1591 = vpack.c.b16 %v1234, %v1227
    %v1592 = vpack.c.b16 %v1235, %v1228
    %v1593 = vpack.c.b16 %v1236, %v1229
    %v1594 = vpack.c.b16 %v1237, %v1230
    %v1595 = vpack.c.b16 %v1238, %v1231
    %v1596 = vpack.c.b16 %v1246, %v1239
    %v1597 = vpack.c.b16 %v1247, %v1240
    %v1598 = vpack.c.b16 %v1248, %v1241
    %v1599 = vpack.c.b16 %v1249, %v1242
    %v1600 = vpack.c.b16 %v1250, %v1243
    %v1601 = vpack.c.b16 %v1251, %v1244
    %v1602 = vpack.c.b16 %v1252, %v1245
    %v1603 = vpack.c.b16 %v1260, %v1253
    %v1604 = vpack.c.b16 %v1261, %v1254
    %v1605 = vpack.c.b16 %v1262, %v1255
    %v1606 = vpack.c.b16 %v1263, %v1256
    %v1607 = vpack.c.b16 %v1264, %v1257
    %v1608 = vpack.c.b16 %v1265, %v1258
    %v1609 = vpack.c.b16 %v1266, %v1259
    %v1610 = vpack.c.b16 %v1274, %v1267
    %v1611 = vpack.c.b16 %v1275, %v1268
    %v1612 = vpack.c.b16 %v1276, %v1269
    %v1613 = vpack.c.b16 %v1277, %v1270
    %v1614 = vpack.c.b16 %v1278, %v1271
    %v1615 = vpack.c.b16 %v1279, %v1272
    %v1616 = vpack.c.b16 %v1280, %v1273
    %v1617 = vpack.c.b16 %v1288, %v1281
    %v1618 = vpack.c.b16 %v1289, %v1282
    %v1619 = vpack.c.b16 %v1290, %v1283
    %v1620 = vpack.c.b16 %v1291, %v1284
    %v1621 = vpack.c.b16 %v1292, %v1285
    %v1622 = vpack.c.b16 %v1293, %v1286
    %v1623 = vpack.c.b16 %v1294, %v1287
    %v1624 = vpack.c.b16 %v1302, %v1295
    %v1625 = vpack.c.b16 %v1303, %v1296
    %v1626 = vpack.c.b16 %v1304, %v1297
    %v1627 = vpack.c.b16 %v1305, %v1298
    %v1628 = vpack.c.b16 %v1306, %v1299
    %v1629 = vpack.c.b16 %v1307, %v1300
    %v1630 = vpack.c.b16 %v1308, %v1301
    %v1631 = vpack.c.b16 %v1316, %v1309
    %v1632 = vpack.c.b16 %v1317, %v1310
    %v1633 = vpack.c.b16 %v1318, %v1311
    %v1634 = vpack.c.b16 %v1319, %v1312
    %v1635 = vpack.c.b16 %v1320, %v1313
    %v1636 = vpack.c.b16 %v1321, %v1314
    %v1637 = vpack.c.b16 %v1322, %v1315
    %v1638 = vpack.c.b16 %v1330, %v1323
    %v1639 = vpack.c.b16 %v1331, %v1324
    %v1640 = vpack.c.b16 %v1332, %v1325
    %v1641 = vpack.c.b16 %v1333, %v1326
    %v1642 = vpack.c.b16 %v1334, %v1327
    %v1643 = vpack.c.b16 %v1335, %v1328
    %v1644 = vpack.c.b16 %v1336, %v1329
    %v1645 = vpack.c.b16 %v1344, %v1337
    %v1646 = vpack.c.b16 %v1345, %v1338
    %v1647 = vpack.c.b16 %v1346, %v1339
    %v1648 = vpack.c.b16 %v1347, %v1340
    %v1649 = vpack.c.b16 %v1348, %v1341
    %v1650 = vpack.c.b16 %v1349, %v1342
    %v1651 = vpack.c.b16 %v1350, %v1343
    %v1652 = vpack.c.b16 %v1358, %v1351
    %v1653 = vpack.c.b16 %v1359, %v1352
    %v1654 = vpack.c.b16 %v1360, %v1353
    %v1655 = vpack.c.b16 %v1361, %v1354
    %v1656 = vpack.c.b16 %v1362, %v1355
    %v1657 = vpack.c.b16 %v1363, %v1356
    %v1658 = vpack.c.b16 %v1364, %v1357
    %v1659 = vpack.c.b16 %v1372, %v1365
    %v1660 = vpack.c.b16 %v1373, %v1366
    %v1661 = vpack.c.b16 %v1374, %v1367
    %v1662 = vpack.c.b16 %v1375, %v1368
    %v1663 = vpack.c.b16 %v1376, %v1369
    %v1664 = vpack.c.b16 %v1377, %v1370
    %v1665 = vpack.c.b16 %v1378, %v1371
    %v1666 = vpack.c.b16 %v1386, %v1379
    %v1667 = vpack.c.b16 %v1387, %v1380
    %v1668 = vpack.c.b16 %v1388, %v1381
    %v1669 = vpack.c.b16 %v1389, %v1382
    %v1670 = vpack.c.b16 %v1390, %v1383
    %v1671 = vpack.c.b16 %v1391, %v1384
    %v1672 = vpack.c.b16 %v1392, %v1385
    %v1673 = vpack.c.b16 %v1400, %v1393
    %v1674 = vpack.c.b16 %v1401, %v1394
    %v1675 = vpack.c.b16 %v1402, %v1395
    %v1676 = vpack.c.b16 %v1403, %v1396
    %v1677 = vpack.c.b16 %v1404, %v1397
    %v1678 = vpack.c.b16 %v1405, %v1398
    %v1679 = vpack.c.b16 %v1406, %v1399
    %v1680 = vpack.c.b16 %v1414, %v1407
    %v1681 = vpack.c.b16 %v1415, %v1408
    %v1682 = vpack.c.b16 %v1416, %v1409
    %v1683 = vpack.c.b16 %v1417, %v1410
    %v1684 = vpack.c.b16 %v1418, %v1411
    %v1685 = vpack.c.b16 %v1419, %v1412
    %v1686 = vpack.c.b16 %v1420, %v1413
    %v1687 = vpack.c.b16 %v1428, %v1421
    %v1688 = vpack.c.b16 %v1429, %v1422
    %v1689 = vpack.c.b16 %v1430, %v1423
    %v1690 = vpack.c.b16 %v1431, %v1424
    %v1691 = vpack.c.b16 %v1432, %v1425
    %v1692 = vpack.c.b16 %v1433, %v1426
    %v1693 = vpack.c.b16 %v1434, %v1427
    %v1694 = vpack.c.b16 %v1442, %v1435
    %v1695 = vpack.c.b16 %v1443, %v1436
    %v1696 = vpack.c.b16 %v1444, %v1437
    %v1697 = vpack.c.b16 %v1445, %v1438
    %v1698 = vpack.c.b16 %v1446, %v1439
    %v1699 = vpack.c.b16 %v1447, %v1440
    %v1700 = vpack.c.b16 %v1448, %v1441
    %v1701 = vpack.c.b16 %v1456, %v1449
    %v1702 = vpack.c.b16 %v1457, %v1450
    %v1703 = vpack.c.b16 %v1458, %v1451
    %v1704 = vpack.c.b16 %v1459, %v1452
    %v1705 = vpack.c.b16 %v1460, %v1453
    %v1706 = vpack.c.b16 %v1461, %v1454
    %v1707 = vpack.c.b16 %v1462, %v1455
    %v1708 = vpack.c.b16 %v1470, %v1463
    %v1709 = vpack.c.b16 %v1471, %v1464
    %v1710 = vpack.c.b16 %v1472, %v1465
    %v1711 = vpack.c.b16 %v1473, %v1466
    %v1712 = vpack.c.b16 %v1474, %v1467
    %v1713 = vpack.c.b16 %v1475, %v1468
    %v1714 = vpack.c.b16 %v1476, %v1469
    %v1715 = vpack.c.b16 %v1484, %v1477
    %v1716 = vpack.c.b16 %v1485, %v1478
    %v1717 = vpack.c.b16 %v1486, %v1479
    %v1718 = vpack.c.b16 %v1487, %v1480
    %v1719 = vpack.c.b16 %v1488, %v1481
    %v1720 = vpack.c.b16 %v1489, %v1482
    %v1721 = vpack.c.b16 %v1490, %v1483
    %v1722 = vpack.c.b16 %v1498, %v1491
    %v1723 = vpack.c.b16 %v1499, %v1492
    %v1724 = vpack.c.b16 %v1500, %v1493
    %v1725 = vpack.c.b16 %v1501, %v1494
    %v1726 = vpack.c.b16 %v1502, %v1495
    %v1727 = vpack.c.b16 %v1503, %v1496
    %v1728 = vpack.c.b16 %v1504, %v1497
    %1953 = vmatprep.subr.bf16.mxu0 %v1555
    %1954 = vmatpush1.bf16.msra.mxu0 %v1554
    %1955 = vmatprep.subr.bf16.mxu0 %v1548
    %1956 = vmatpush1.bf16.msra.mxu0 %v1547
    %1957 = vmatprep.subr.bf16.mxu0 %v1541
    %1958 = vmatpush1.bf16.msra.mxu0 %v1540
    %1959 = vmatprep.subr.bf16.mxu0 %v1534
    %1960 = vmatpush1.bf16.msra.mxu0 %v1533
    %1961 = vmatprep.subr.bf16.mxu0 %v1527
    %1962 = vmatpush1.bf16.msra.mxu0 %v1526
    %1963 = vmatprep.subr.bf16.mxu0 %v1520
    %1964 = vmatpush1.bf16.msra.mxu0 %v1519
    %1965 = vmatprep.subr.bf16.mxu0 %v1513
    %1966 = vmatpush1.bf16.msra.mxu0 %v1512
    %1967 = vmatprep.subr.bf16.mxu0 %v1506
    %1968 = vmatpush1.bf16.msra.mxu0 %v1505
    %1969 = vmatprep.subr.bf16.mxu0 %v1611
    %1970 = vmatpush2.bf16.msra.mxu0 %v1610
    %1971 = vmatprep.subr.bf16.mxu0 %v1604
    %1972 = vmatpush2.bf16.msra.mxu0 %v1603
    %1973 = vmatprep.subr.bf16.mxu0 %v1597
    %1974 = vmatpush2.bf16.msra.mxu0 %v1596
    %1975 = vmatprep.subr.bf16.mxu0 %v1590
    %1976 = vmatpush2.bf16.msra.mxu0 %v1589
    %1977 = vmatprep.subr.bf16.mxu0 %v1583
    %1978 = vmatpush2.bf16.msra.mxu0 %v1582
    %1979 = vmatprep.subr.bf16.mxu0 %v1576
    %1980 = vmatpush2.bf16.msra.mxu0 %v1575
    %1981 = vmatprep.subr.bf16.mxu0 %v1569
    %1982 = vmatpush2.bf16.msra.mxu0 %v1568
    %1983 = vmatprep.subr.bf16.mxu0 %v1562
    %1984 = vmatpush2.bf16.msra.mxu0 %v1561
    %1985 = vmatprep.mubr.bf16.mxu0 %v505
    %1986 = vmatmul.mubr.bf16.gmra.mxu0 %v504
    %v1987 = vpop.f32.mrf.mxu0
    %v1988 = vadd.f32 %v769, %v1987
    %v1989 = vpop.f32.mrf.mxu0
    %v1990 = vadd.f32 %v773, %v1989
    %v1991 = vpop.f32.mrf.mxu0
    %v1992 = vpop.f32.mrf.mxu0
    %1993 = vdwg.mxu0
    %1994 = vmatprep.subr.bf16.mxu0 %v1667
    %1995 = vmatpush1.bf16.msra.mxu0 %v1666
    %1996 = vmatprep.subr.bf16.mxu0 %v1660
    %1997 = vmatpush1.bf16.msra.mxu0 %v1659
    %1998 = vmatprep.subr.bf16.mxu0 %v1653
    %1999 = vmatpush1.bf16.msra.mxu0 %v1652
    %2000 = vmatprep.subr.bf16.mxu0 %v1646
    %2001 = vmatpush1.bf16.msra.mxu0 %v1645
    %2002 = vmatprep.subr.bf16.mxu0 %v1639
    %2003 = vmatpush1.bf16.msra.mxu0 %v1638
    %2004 = vmatprep.subr.bf16.mxu0 %v1632
    %2005 = vmatpush1.bf16.msra.mxu0 %v1631
    %2006 = vmatprep.subr.bf16.mxu0 %v1625
    %2007 = vmatpush1.bf16.msra.mxu0 %v1624
    %2008 = vmatprep.subr.bf16.mxu0 %v1618
    %2009 = vmatpush1.bf16.msra.mxu0 %v1617
    %2010 = vmatprep.subr.bf16.mxu0 %v1723
    %2011 = vmatpush2.bf16.msra.mxu0 %v1722
    %2012 = vmatprep.subr.bf16.mxu0 %v1716
    %2013 = vmatpush2.bf16.msra.mxu0 %v1715
    %2014 = vmatprep.subr.bf16.mxu0 %v1709
    %2015 = vmatpush2.bf16.msra.mxu0 %v1708
    %2016 = vmatprep.subr.bf16.mxu0 %v1702
    %2017 = vmatpush2.bf16.msra.mxu0 %v1701
    %2018 = vmatprep.subr.bf16.mxu0 %v1695
    %2019 = vmatpush2.bf16.msra.mxu0 %v1694
    %2020 = vmatprep.subr.bf16.mxu0 %v1688
    %2021 = vmatpush2.bf16.msra.mxu0 %v1687
    %2022 = vmatprep.subr.bf16.mxu0 %v1681
    %2023 = vmatpush2.bf16.msra.mxu0 %v1680
    %2024 = vmatprep.subr.bf16.mxu0 %v1674
    %2025 = vmatpush2.bf16.msra.mxu0 %v1673
    %2026 = vmatprep.mubr.bf16.mxu0 %v507
    %2027 = vmatmul.mubr.bf16.gmra.mxu0 %v506
    %v2028 = vpop.f32.mrf.mxu0
    %v2029 = vadd.f32 %v1988, %v2028
    %v2030 = vpop.f32.mrf.mxu0
    %v2031 = vadd.f32 %v1990, %v2030
    %v2032 = vpop.f32.mrf.mxu0
    %v2033 = vpop.f32.mrf.mxu0
    %2034 = vdwg.mxu0
    %2035 = vmatprep.subr.bf16.mxu0 %v1557
    %2036 = vmatpush1.bf16.msra.mxu0 %v1556
    %2037 = vmatprep.subr.bf16.mxu0 %v1550
    %2038 = vmatpush1.bf16.msra.mxu0 %v1549
    %2039 = vmatprep.subr.bf16.mxu0 %v1543
    %2040 = vmatpush1.bf16.msra.mxu0 %v1542
    %2041 = vmatprep.subr.bf16.mxu0 %v1536
    %2042 = vmatpush1.bf16.msra.mxu0 %v1535
    %2043 = vmatprep.subr.bf16.mxu0 %v1529
    %2044 = vmatpush1.bf16.msra.mxu0 %v1528
    %2045 = vmatprep.subr.bf16.mxu0 %v1522
    %2046 = vmatpush1.bf16.msra.mxu0 %v1521
    %2047 = vmatprep.subr.bf16.mxu0 %v1515
    %2048 = vmatpush1.bf16.msra.mxu0 %v1514
    %2049 = vmatprep.subr.bf16.mxu0 %v1508
    %2050 = vmatpush1.bf16.msra.mxu0 %v1507
    %2051 = vmatprep.subr.bf16.mxu0 %v1613
    %2052 = vmatpush2.bf16.msra.mxu0 %v1612
    %2053 = vmatprep.subr.bf16.mxu0 %v1606
    %2054 = vmatpush2.bf16.msra.mxu0 %v1605
    %2055 = vmatprep.subr.bf16.mxu0 %v1599
    %2056 = vmatpush2.bf16.msra.mxu0 %v1598
    %2057 = vmatprep.subr.bf16.mxu0 %v1592
    %2058 = vmatpush2.bf16.msra.mxu0 %v1591
    %2059 = vmatprep.subr.bf16.mxu0 %v1585
    %2060 = vmatpush2.bf16.msra.mxu0 %v1584
    %2061 = vmatprep.subr.bf16.mxu0 %v1578
    %2062 = vmatpush2.bf16.msra.mxu0 %v1577
    %2063 = vmatprep.subr.bf16.mxu0 %v1571
    %2064 = vmatpush2.bf16.msra.mxu0 %v1570
    %2065 = vmatprep.subr.bf16.mxu0 %v1564
    %2066 = vmatpush2.bf16.msra.mxu0 %v1563
    %2067 = vmatprep.mubr.bf16.mxu0 %v505
    %2068 = vmatmul.mubr.bf16.gmra.mxu0 %v504
    %v2069 = vpop.f32.mrf.mxu0
    %v2070 = vadd.f32 %v777, %v2069
    %v2071 = vpop.f32.mrf.mxu0
    %v2072 = vadd.f32 %v781, %v2071
    %v2073 = vpop.f32.mrf.mxu0
    %v2074 = vpop.f32.mrf.mxu0
    %2075 = vdwg.mxu0
    %2076 = vmatprep.subr.bf16.mxu0 %v1669
    %2077 = vmatpush1.bf16.msra.mxu0 %v1668
    %2078 = vmatprep.subr.bf16.mxu0 %v1662
    %2079 = vmatpush1.bf16.msra.mxu0 %v1661
    %2080 = vmatprep.subr.bf16.mxu0 %v1655
    %2081 = vmatpush1.bf16.msra.mxu0 %v1654
    %2082 = vmatprep.subr.bf16.mxu0 %v1648
    %2083 = vmatpush1.bf16.msra.mxu0 %v1647
    %2084 = vmatprep.subr.bf16.mxu0 %v1641
    %2085 = vmatpush1.bf16.msra.mxu0 %v1640
    %2086 = vmatprep.subr.bf16.mxu0 %v1634
    %2087 = vmatpush1.bf16.msra.mxu0 %v1633
    %2088 = vmatprep.subr.bf16.mxu0 %v1627
    %2089 = vmatpush1.bf16.msra.mxu0 %v1626
    %2090 = vmatprep.subr.bf16.mxu0 %v1620
    %2091 = vmatpush1.bf16.msra.mxu0 %v1619
    %2092 = vmatprep.subr.bf16.mxu0 %v1725
    %2093 = vmatpush2.bf16.msra.mxu0 %v1724
    %2094 = vmatprep.subr.bf16.mxu0 %v1718
    %2095 = vmatpush2.bf16.msra.mxu0 %v1717
    %2096 = vmatprep.subr.bf16.mxu0 %v1711
    %2097 = vmatpush2.bf16.msra.mxu0 %v1710
    %2098 = vmatprep.subr.bf16.mxu0 %v1704
    %2099 = vmatpush2.bf16.msra.mxu0 %v1703
    %2100 = vmatprep.subr.bf16.mxu0 %v1697
    %2101 = vmatpush2.bf16.msra.mxu0 %v1696
    %2102 = vmatprep.subr.bf16.mxu0 %v1690
    %2103 = vmatpush2.bf16.msra.mxu0 %v1689
    %2104 = vmatprep.subr.bf16.mxu0 %v1683
    %2105 = vmatpush2.bf16.msra.mxu0 %v1682
    %2106 = vmatprep.subr.bf16.mxu0 %v1676
    %2107 = vmatpush2.bf16.msra.mxu0 %v1675
    %2108 = vmatprep.mubr.bf16.mxu0 %v507
    %2109 = vmatmul.mubr.bf16.gmra.mxu0 %v506
    %v2110 = vpop.f32.mrf.mxu0
    %v2111 = vadd.f32 %v2070, %v2110
    %v2112 = vpop.f32.mrf.mxu0
    %v2113 = vadd.f32 %v2072, %v2112
    %v2114 = vpop.f32.mrf.mxu0
    %v2115 = vpop.f32.mrf.mxu0
    %2116 = vdwg.mxu0
    %2117 = vmatprep.subr.bf16.mxu0 %v1559
    %2118 = vmatpush1.bf16.msra.mxu0 %v1558
    %2119 = vmatprep.subr.bf16.mxu0 %v1552
    %2120 = vmatpush1.bf16.msra.mxu0 %v1551
    %2121 = vmatprep.subr.bf16.mxu0 %v1545
    %2122 = vmatpush1.bf16.msra.mxu0 %v1544
    %2123 = vmatprep.subr.bf16.mxu0 %v1538
    %2124 = vmatpush1.bf16.msra.mxu0 %v1537
    %2125 = vmatprep.subr.bf16.mxu0 %v1531
    %2126 = vmatpush1.bf16.msra.mxu0 %v1530
    %2127 = vmatprep.subr.bf16.mxu0 %v1524
    %2128 = vmatpush1.bf16.msra.mxu0 %v1523
    %2129 = vmatprep.subr.bf16.mxu0 %v1517
    %2130 = vmatpush1.bf16.msra.mxu0 %v1516
    %2131 = vmatprep.subr.bf16.mxu0 %v1510
    %2132 = vmatpush1.bf16.msra.mxu0 %v1509
    %2133 = vmatprep.subr.bf16.mxu0 %v1615
    %2134 = vmatpush2.bf16.msra.mxu0 %v1614
    %2135 = vmatprep.subr.bf16.mxu0 %v1608
    %2136 = vmatpush2.bf16.msra.mxu0 %v1607
    %2137 = vmatprep.subr.bf16.mxu0 %v1601
    %2138 = vmatpush2.bf16.msra.mxu0 %v1600
    %2139 = vmatprep.subr.bf16.mxu0 %v1594
    %2140 = vmatpush2.bf16.msra.mxu0 %v1593
    %2141 = vmatprep.subr.bf16.mxu0 %v1587
    %2142 = vmatpush2.bf16.msra.mxu0 %v1586
    %2143 = vmatprep.subr.bf16.mxu0 %v1580
    %2144 = vmatpush2.bf16.msra.mxu0 %v1579
    %2145 = vmatprep.subr.bf16.mxu0 %v1573
    %2146 = vmatpush2.bf16.msra.mxu0 %v1572
    %2147 = vmatprep.subr.bf16.mxu0 %v1566
    %2148 = vmatpush2.bf16.msra.mxu0 %v1565
    %2149 = vmatprep.mubr.bf16.mxu0 %v505
    %2150 = vmatmul.mubr.bf16.gmra.mxu0 %v504
    %v2151 = vpop.f32.mrf.mxu0
    %v2152 = vadd.f32 %v785, %v2151
    %v2153 = vpop.f32.mrf.mxu0
    %v2154 = vadd.f32 %v789, %v2153
    %v2155 = vpop.f32.mrf.mxu0
    %v2156 = vpop.f32.mrf.mxu0
    %2157 = vdwg.mxu0
    %2158 = vmatprep.subr.bf16.mxu0 %v1671
    %2159 = vmatpush1.bf16.msra.mxu0 %v1670
    %2160 = vmatprep.subr.bf16.mxu0 %v1664
    %2161 = vmatpush1.bf16.msra.mxu0 %v1663
    %2162 = vmatprep.subr.bf16.mxu0 %v1657
    %2163 = vmatpush1.bf16.msra.mxu0 %v1656
    %2164 = vmatprep.subr.bf16.mxu0 %v1650
    %2165 = vmatpush1.bf16.msra.mxu0 %v1649
    %2166 = vmatprep.subr.bf16.mxu0 %v1643
    %2167 = vmatpush1.bf16.msra.mxu0 %v1642
    %2168 = vmatprep.subr.bf16.mxu0 %v1636
    %2169 = vmatpush1.bf16.msra.mxu0 %v1635
    %2170 = vmatprep.subr.bf16.mxu0 %v1629
    %2171 = vmatpush1.bf16.msra.mxu0 %v1628
    %2172 = vmatprep.subr.bf16.mxu0 %v1622
    %2173 = vmatpush1.bf16.msra.mxu0 %v1621
    %2174 = vmatprep.subr.bf16.mxu0 %v1727
    %2175 = vmatpush2.bf16.msra.mxu0 %v1726
    %2176 = vmatprep.subr.bf16.mxu0 %v1720
    %2177 = vmatpush2.bf16.msra.mxu0 %v1719
    %2178 = vmatprep.subr.bf16.mxu0 %v1713
    %2179 = vmatpush2.bf16.msra.mxu0 %v1712
    %2180 = vmatprep.subr.bf16.mxu0 %v1706
    %2181 = vmatpush2.bf16.msra.mxu0 %v1705
    %2182 = vmatprep.subr.bf16.mxu0 %v1699
    %2183 = vmatpush2.bf16.msra.mxu0 %v1698
    %2184 = vmatprep.subr.bf16.mxu0 %v1692
    %2185 = vmatpush2.bf16.msra.mxu0 %v1691
    %2186 = vmatprep.subr.bf16.mxu0 %v1685
    %2187 = vmatpush2.bf16.msra.mxu0 %v1684
    %2188 = vmatprep.subr.bf16.mxu0 %v1678
    %2189 = vmatpush2.bf16.msra.mxu0 %v1677
    %2190 = vmatprep.mubr.bf16.mxu0 %v507
    %2191 = vmatmul.mubr.bf16.gmra.mxu0 %v506
    %v2192 = vpop.f32.mrf.mxu0
    %v2193 = vadd.f32 %v2152, %v2192
    %v2194 = vpop.f32.mrf.mxu0
    %v2195 = vadd.f32 %v2154, %v2194
    %v2196 = vpop.f32.mrf.mxu0
    %v2197 = vpop.f32.mrf.mxu0
    %2198 = vdwg.mxu0
    %2199 = vmatprep.subr.bf16.mxu0 0
    %2200 = vmatpush1.bf16.msra.mxu0 %v1560
    %2201 = vmatprep.subr.bf16.mxu0 0
    %2202 = vmatpush1.bf16.msra.mxu0 %v1553
    %2203 = vmatprep.subr.bf16.mxu0 0
    %2204 = vmatpush1.bf16.msra.mxu0 %v1546
    %2205 = vmatprep.subr.bf16.mxu0 0
    %2206 = vmatpush1.bf16.msra.mxu0 %v1539
    %2207 = vmatprep.subr.bf16.mxu0 0
    %2208 = vmatpush1.bf16.msra.mxu0 %v1532
    %2209 = vmatprep.subr.bf16.mxu0 0
    %2210 = vmatpush1.bf16.msra.mxu0 %v1525
    %2211 = vmatprep.subr.bf16.mxu0 0
    %2212 = vmatpush1.bf16.msra.mxu0 %v1518
    %2213 = vmatprep.subr.bf16.mxu0 0
    %2214 = vmatpush1.bf16.msra.mxu0 %v1511
    %2215 = vmatprep.subr.bf16.mxu0 0
    %2216 = vmatpush2.bf16.msra.mxu0 %v1616
    %2217 = vmatprep.subr.bf16.mxu0 0
    %2218 = vmatpush2.bf16.msra.mxu0 %v1609
    %2219 = vmatprep.subr.bf16.mxu0 0
    %2220 = vmatpush2.bf16.msra.mxu0 %v1602
    %2221 = vmatprep.subr.bf16.mxu0 0
    %2222 = vmatpush2.bf16.msra.mxu0 %v1595
    %2223 = vmatprep.subr.bf16.mxu0 0
    %2224 = vmatpush2.bf16.msra.mxu0 %v1588
    %2225 = vmatprep.subr.bf16.mxu0 0
    %2226 = vmatpush2.bf16.msra.mxu0 %v1581
    %2227 = vmatprep.subr.bf16.mxu0 0
    %2228 = vmatpush2.bf16.msra.mxu0 %v1574
    %2229 = vmatprep.subr.bf16.mxu0 0
    %2230 = vmatpush2.bf16.msra.mxu0 %v1567
    %2231 = vmatprep.mubr.bf16.mxu0 %v505
    %2232 = vmatmul.mubr.bf16.gmra.mxu0 %v504
    %v2233 = vpop.f32.mrf.mxu0
    %v2234 = vadd.f32 %v793, %v2233
    %v2235 = vpop.f32.mrf.mxu0
    %v2236 = vpop.f32.mrf.mxu0
    %v2237 = vpop.f32.mrf.mxu0
    %2238 = vdwg.mxu0
    %2239 = vmatprep.subr.bf16.mxu0 0
    %2240 = vmatpush1.bf16.msra.mxu0 %v1672
    %2241 = vmatprep.subr.bf16.mxu0 0
    %2242 = vmatpush1.bf16.msra.mxu0 %v1665
    %2243 = vmatprep.subr.bf16.mxu0 0
    %2244 = vmatpush1.bf16.msra.mxu0 %v1658
    %2245 = vmatprep.subr.bf16.mxu0 0
    %2246 = vmatpush1.bf16.msra.mxu0 %v1651
    %2247 = vmatprep.subr.bf16.mxu0 0
    %2248 = vmatpush1.bf16.msra.mxu0 %v1644
    %2249 = vmatprep.subr.bf16.mxu0 0
    %2250 = vmatpush1.bf16.msra.mxu0 %v1637
    %2251 = vmatprep.subr.bf16.mxu0 0
    %2252 = vmatpush1.bf16.msra.mxu0 %v1630
    %2253 = vmatprep.subr.bf16.mxu0 0
    %2254 = vmatpush1.bf16.msra.mxu0 %v1623
    %2255 = vmatprep.subr.bf16.mxu0 0
    %2256 = vmatpush2.bf16.msra.mxu0 %v1728
    %2257 = vmatprep.subr.bf16.mxu0 0
    %2258 = vmatpush2.bf16.msra.mxu0 %v1721
    %2259 = vmatprep.subr.bf16.mxu0 0
    %2260 = vmatpush2.bf16.msra.mxu0 %v1714
    %2261 = vmatprep.subr.bf16.mxu0 0
    %2262 = vmatpush2.bf16.msra.mxu0 %v1707
    %2263 = vmatprep.subr.bf16.mxu0 0
    %2264 = vmatpush2.bf16.msra.mxu0 %v1700
    %2265 = vmatprep.subr.bf16.mxu0 0
    %2266 = vmatpush2.bf16.msra.mxu0 %v1693
    %2267 = vmatprep.subr.bf16.mxu0 0
    %2268 = vmatpush2.bf16.msra.mxu0 %v1686
    %2269 = vmatprep.subr.bf16.mxu0 0
    %2270 = vmatpush2.bf16.msra.mxu0 %v1679
    %2271 = vmatprep.mubr.bf16.mxu0 %v507
    %2272 = vmatmul.mubr.bf16.gmra.mxu0 %v506
    %v2273 = vpop.f32.mrf.mxu0
    %v2274 = vadd.f32 %v2234, %v2273
    %v2275 = vpop.f32.mrf.mxu0
    %v2276 = vpop.f32.mrf.mxu0
    %v2277 = vpop.f32.mrf.mxu0
    %2278 = vdwg.mxu0
    %2279 = vst [vmem:[#allocation2] sm:$0xff] %v2029
    %2280 = vst [vmem:[#allocation2 + $0x8] sm:$0xff] %v2031
    %2281 = vst [vmem:[#allocation2 + $0x10] sm:$0xff] %v2111
    %2282 = vst [vmem:[#allocation2 + $0x18] sm:$0xff] %v2113
    %2283 = vst [vmem:[#allocation2 + $0x20] sm:$0xff] %v2193
    %2284 = vst [vmem:[#allocation2 + $0x28] sm:$0xff] %v2195
    %2285 = vst.msk [vmem:[#allocation2 + $0x30] sm:$0xff] %vm36, %v2274
    // Predicated region
    $region34: #{tpu_custom_call.1} parent=1 // pred_check
      _
    $region35: #{tpu_custom_call.1} parent=1 // pred_check_branch
      %2287 = sbr.rel (0) target = $region37
    $region36: #{tpu_custom_call.1} parent=1 // pred_region
      %s2289 = ssub.s32 896, 896
      %2290 = vsyncadd [#allocation3], %s2289
      %s2292 = sshll.u32 [#allocation2], 4
      %s2293 = int_to_ptr.vmem [resolvable:$true] %s2292
      %2295 = dma.vmem_to_hbm [thread:$0]  %s2293, 896, %s8, [#allocation3]
    $region37: #{tpu_custom_call.1} parent=1 // pred_fallthru
      _
    // Predicated region
    $region38: #{tpu_custom_call.1} parent=1 // pred_check
      _
    $region39: #{tpu_custom_call.1} parent=1 // pred_check_branch
      %2297 = sbr.rel (0) target = $region41
    $region40: #{tpu_custom_call.1} parent=1 // pred_region
      %2298 = dma.done [#allocation3], 896
    $region41: #{tpu_custom_call.1} parent=1 // pred_fallthru
      _
    %2299 = vsyncpa [#allocation3], 1

</llo_original>
